<compile_context>
chip_gen: v7x
topology: tpu7x:2x2x1
jax: 0.10.0
libtpu: 0.0.40
codegen_flags: <defaults>
</compile_context>

<pallas_src>
import functools

import jax
import jax.numpy as jnp
from jax.experimental import pallas as pl
from jax.experimental.pallas import tpu as pltpu


def _attention_kernel(enc_ref, att2_ref, w_enc_ref, w_full_ref,
                      awe_ref, alpha_ref, scores_buf, awe_buf, *, pixel_chunk):
    BB, P, E = enc_ref.shape
    A = w_enc_ref.shape[1]
    P_lane = scores_buf.shape[1]
    E_out = awe_ref.shape[1]

    att2 = att2_ref[...]                        # (BB, A)    f32 (hoisted proj)
    w_enc = w_enc_ref[...]                      # (E, A)     bf16
    w_full = w_full_ref[...].reshape(1, 1, A)   # (1, 1, A)  f32

    # Lanes >= P of the score buffer stay at -1e30 so softmax gives them ~0
    # weight.  f32 keeps -1e30 finite (it would overflow in bf16).
    if P_lane != P:
        scores_buf[...] = jnp.full((BB, P_lane), -1e30, jnp.float32)

    # ---- pass 1: per-pixel-chunk scores -------------------------------------
    # Only the (BB, P_lane) f32 score buffer stays live across chunks; the
    # (BB, pc, A) f32 att1/h intermediates are chunk-local, which bounds
    # VMEM/vreg pressure at realistic dims (P~256, E~768-2048, A~512).
    # Static Python loop => fully unrolled at trace time with static, aligned
    # slice offsets (LLO gets full visibility).
    for s in range(0, P, pixel_chunk):
        pc = min(pixel_chunk, P - s)
        enc_c = enc_ref[:, s:s + pc, :]                            # (BB,pc,E) bf16
        att1_c = jnp.dot(enc_c.reshape(BB * pc, E), w_enc,
                         preferred_element_type=jnp.float32)       # MXU, f32 acc
        att1_c = att1_c.reshape(BB, pc, A)
        h_c = jnp.maximum(att1_c + att2[:, None, :], 0.0)          # ReLU
        # full_att scoring: VPU multiply + lane reduction (no N=1 MXU matmul);
        # full_att's bias is dropped (softmax is shift-invariant).
        scores_buf[:, s:s + pc] = jnp.sum(h_c * w_full, axis=-1)   # (BB, pc)

    # ---- softmax over the lane-dense pixel axis ------------------------------
    scores = scores_buf[...]                                       # (BB, P_lane)
    m = jnp.max(scores, axis=-1, keepdims=True)
    e = jnp.exp(scores - m)
    denom = jnp.sum(e, axis=-1, keepdims=True)
    # approx reciprocal (EUP slot): alpha rows sum to 1 only to ~1e-3; fine for
    # the forward weighted encoding.  Use an exact divide if this ever feeds
    # the doubly-stochastic attention regularizer during training.
    alpha = e * pl.reciprocal(denom, approx=True)                  # (BB, P_lane)
    alpha_ref[...] = alpha                                         # lane-dense store

    # ---- pass 2: attention-weighted encoding ---------------------------------
    # bf16 multiply (VPU) + f32 accumulation; on v5e (no bf16 VALU) the
    # compiler upcasts, matching the previous f32 path.
    awe = jnp.zeros((BB, E), jnp.float32)
    for s in range(0, P, pixel_chunk):
        pc = min(pixel_chunk, P - s)
        enc_c = enc_ref[:, s:s + pc, :]                            # (BB,pc,E) bf16
        a_c = alpha[:, s:s + pc].astype(jnp.bfloat16)              # (BB,pc)
        prod = enc_c * a_c[:, :, None]                             # bf16 VPU mul
        awe = awe + jnp.sum(prod.astype(jnp.float32), axis=1)      # f32 accumulate

    if E_out == E:
        awe_ref[...] = awe
    else:
        # Route through VMEM scratch so the HBM store stays unmasked/lane-dense
        # (only triggers for toy E < 128; real encoder_dim=768 is lane aligned).
        awe_buf[...] = jnp.zeros((BB, E_out), jnp.float32)
        awe_buf[:, :E] = awe
        awe_ref[...] = awe_buf[...]


def attention_forward(encoder_out, decoder_hidden, params, *,
                      block_b=16, pixel_chunk=128):
    """encoder_out: (B, P, E), decoder_hidden: (B, D).
    Returns (awe (B, E), alpha (B, P))."""
    B, P, E = encoder_out.shape
    A = params["w_enc"].shape[1]

    block_b = max(1, min(block_b, B))
    grid = (pl.cdiv(B, block_b),)          # batch grid; "parallel" -> megacore

    P_lane = ((P + 127) // 128) * 128      # lane-dense alpha store / softmax
    E_out = ((E + 127) // 128) * 128       # lane-dense awe store

    # No padded copy of encoder_out: only a dtype cast (fusable into the
    # pallas_call).  Producers that already emit bf16 avoid even that.
    enc = encoder_out if encoder_out.dtype == jnp.bfloat16 \
        else encoder_out.astype(jnp.bfloat16)

    # Decoder projection hoisted out of the kernel: one full-batch (B,D)@(D,A)
    # XLA matmul at full M efficiency; b_enc + b_dec folded in, b_full dropped
    # (softmax shift-invariance).
    att2 = (decoder_hidden.astype(jnp.float32)
            @ params["w_dec"].astype(jnp.float32)
            + params["b_enc"] + params["b_dec"]).astype(jnp.float32)   # (B, A)

    w_enc = params["w_enc"].astype(jnp.bfloat16)                   # (E, A)
    w_full = params["w_full"].reshape(1, A).astype(jnp.float32)    # (1, A)

    kernel = functools.partial(_attention_kernel,
                               pixel_chunk=min(pixel_chunk, P))

    flops = (2 * B * P * E * A      # encoder projection
             + 2 * B * P * A        # scoring
             + 2 * B * P * E)       # weighted sum
    bytes_accessed = (enc.size * 2 + att2.size * 4 + w_enc.size * 2
                      + w_full.size * 4 + B * E_out * 4 + B * P_lane * 4)

    awe, alpha = pl.pallas_call(
        kernel,
        out_shape=(jax.ShapeDtypeStruct((B, E_out), jnp.float32),
                   jax.ShapeDtypeStruct((B, P_lane), jnp.float32)),
        grid=grid,
        in_specs=[
            pl.BlockSpec((block_b, P, E), lambda i: (i, 0, 0)),    # encoder_out bf16
            pl.BlockSpec((block_b, A), lambda i: (i, 0)),          # hoisted att2 f32
            pl.BlockSpec((E, A), lambda i: (0, 0)),                # w_enc bf16
            pl.BlockSpec((1, A), lambda i: (0, 0)),                # w_full row f32
        ],
        out_specs=(
            pl.BlockSpec((block_b, E_out), lambda i: (i, 0)),      # awe (lane-dense)
            pl.BlockSpec((block_b, P_lane), lambda i: (i, 0)),     # alpha (lane-dense)
        ),
        scratch_shapes=[
            pltpu.VMEM((block_b, P_lane), jnp.float32),            # scores buffer
            pltpu.VMEM((block_b, E_out), jnp.float32),             # awe store staging
        ],
        compiler_params=pltpu.CompilerParams(
            dimension_semantics=("parallel",),
            # v5e/v6e have 128 MiB physical VMEM (could go 64-100 MiB with a
            # larger block_b); v7x has 64 MiB -- the chunked body keeps actual
            # use far below this cap at realistic dims.
            vmem_limit_bytes=64 * 1024 * 1024,
            # Let XLA fuse the f32->bf16 cast of encoder_out into the kernel's
            # operand stream instead of a separate HBM read+write pass.
            allow_input_fusion=[True, False, False, False]),
        cost_estimate=pl.CostEstimate(
            flops=flops,
            transcendentals=B * P_lane + B,
            bytes_accessed=bytes_accessed),
    )(enc, att2, w_enc, w_full)

    return awe[:, :E], alpha[:, :P]


def _reference(encoder_out, decoder_hidden, params):
    att1 = encoder_out @ params["w_enc"] + params["b_enc"]
    att2 = decoder_hidden @ params["w_dec"] + params["b_dec"]
    h = jnp.maximum(att1 + att2[:, None, :], 0.0)
    att = (h @ params["w_full"] + params["b_full"])[..., 0]
    alpha = jax.nn.softmax(att, axis=1)
    awe = jnp.sum(encoder_out * alpha[:, :, None], axis=1)
    return awe, alpha


if __name__ == "__main__":
    # Small, module-consistent shapes: batch=32 (two block_b=16 grid steps so
    # both v7x TensorCores get a block), 4x4 encoded image -> 16 pixels,
    # encoder_dim=32, decoder_dim=32, attention_dim=32.
    B, P, E, D, A = 32, 16, 32, 32, 32

    key = jax.random.PRNGKey(0)
    k0, k1, k2, k3, k4, k5, k6, k7 = jax.random.split(key, 8)

    encoder_out = jax.random.normal(k0, (B, P, E), dtype=jnp.float32)
    decoder_hidden = jax.random.normal(k1, (B, D), dtype=jnp.float32)

    params = {
        "w_enc": 0.1 * jax.random.normal(k2, (E, A), dtype=jnp.float32),
        "b_enc": 0.1 * jax.random.normal(k3, (A,), dtype=jnp.float32),
        "w_dec": 0.1 * jax.random.normal(k4, (D, A), dtype=jnp.float32),
        "b_dec": 0.1 * jax.random.normal(k5, (A,), dtype=jnp.float32),
        "w_full": 0.1 * jax.random.normal(k6, (A, 1), dtype=jnp.float32),
        "b_full": 0.1 * jax.random.normal(k7, (1,), dtype=jnp.float32),
    }

    awe, alpha = attention_forward(encoder_out, decoder_hidden, params,
                                   block_b=16)
    jax.block_until_ready((awe, alpha))

    awe_ref, alpha_ref = _reference(encoder_out, decoder_hidden, params)
    # bf16 MXU/VPU operands + approx reciprocal -> compare at ~1e-2 tolerance.
    assert jnp.allclose(awe, awe_ref, atol=1e-2, rtol=1e-2)
    assert jnp.allclose(alpha, alpha_ref, atol=1e-2, rtol=1e-2)

    # TODO(synk): the embedding lookup, LSTMCell recurrence, dropout, fc head,
    # caption-length sorting and the data-dependent per-timestep batch
    # truncation of DecoderWithAttention remain host-level JAX/control flow;
    # only the Attention submodule is a Pallas kernel.

    print("KERNEL_OK")
</pallas_src>

<mosaic_0001>
module attributes {stable_mosaic.version = 11 : i64} {
  func.func @_attention_kernel(%arg0: i32, %arg1: memref<16x16x32xbf16, #tpu.memory_space<vmem>>, %arg2: memref<16x32xf32, #tpu.memory_space<vmem>>, %arg3: memref<32x32xbf16, #tpu.memory_space<vmem>>, %arg4: memref<1x32xf32, #tpu.memory_space<vmem>>, %arg5: memref<16x128xf32, #tpu.memory_space<vmem>>, %arg6: memref<16x128xf32, #tpu.memory_space<vmem>>, %arg7: memref<16x128xf32, #tpu.memory_space<vmem>>, %arg8: memref<16x128xf32, #tpu.memory_space<vmem>>) attributes {dimension_semantics = [#tpu.dimension_semantics<parallel>], iteration_bounds = array<i64: 2>, scalar_prefetch = 0 : i64, scratch_operands = 2 : i64, tpu.core_type = #tpu.core_type<tc>, window_params = [{transform_indices = @transform_0, window_bounds = array<i64: 16, 16, 32>}, {transform_indices = @transform_1, window_bounds = array<i64: 16, 32>}, {pipeline_mode = #tpu.pipeline_mode<synchronous>, transform_indices = @transform_2, window_bounds = array<i64: 32, 32>}, {pipeline_mode = #tpu.pipeline_mode<synchronous>, transform_indices = @transform_3, window_bounds = array<i64: 1, 32>}, {transform_indices = @transform_4, window_bounds = array<i64: 16, 128>}, {transform_indices = @transform_5, window_bounds = array<i64: 16, 128>}]} {
    %c0 = arith.constant 0 : index
    %c0_0 = arith.constant 0 : index
    %0 = vector.load %arg2[%c0, %c0_0] : memref<16x32xf32, #tpu.memory_space<vmem>>, vector<16x32xf32>
    %c0_1 = arith.constant 0 : index
    %c0_2 = arith.constant 0 : index
    %1 = vector.load %arg3[%c0_1, %c0_2] : memref<32x32xbf16, #tpu.memory_space<vmem>>, vector<32x32xbf16>
    %c0_3 = arith.constant 0 : index
    %c0_4 = arith.constant 0 : index
    %2 = vector.load %arg4[%c0_3, %c0_4] : memref<1x32xf32, #tpu.memory_space<vmem>>, vector<1x32xf32>
    %3 = vector.shape_cast %2 : vector<1x32xf32> to vector<1x1x32xf32>
    %cst = arith.constant -1.000000e+30 : f32
    %4 = vector.broadcast %cst : f32 to vector<16x128xf32>
    %c0_5 = arith.constant 0 : index
    %c0_6 = arith.constant 0 : index
    %5 = vector.load %arg7[%c0_5, %c0_6] : memref<16x128xf32, #tpu.memory_space<vmem>>, vector<16x128xf32>
    tpu.vector_store %arg7[%c0_5, %c0_6], %4 {strides = array<i32>} : memref<16x128xf32, #tpu.memory_space<vmem>>, vector<16x128xf32>,
    %c0_7 = arith.constant 0 : index
    %c0_8 = arith.constant 0 : index
    %c0_9 = arith.constant 0 : index
    %6 = vector.load %arg1[%c0_7, %c0_8, %c0_9] : memref<16x16x32xbf16, #tpu.memory_space<vmem>>, vector<16x16x32xbf16>
    %7 = vector.shape_cast %6 : vector<16x16x32xbf16> to vector<256x32xbf16>
    %cst_10 = arith.constant dense<0.000000e+00> : vector<256x32xf32>
    %8 = tpu.matmul %7, %1, %cst_10 {dimension_numbers = #tpu.dot_dimension_numbers<[1], [0], [0], [1], [0, 0, 1, 1], [], []>} : vector<256x32xbf16>, vector<32x32xbf16>, vector<256x32xf32> -> vector<256x32xf32>
    %9 = vector.shape_cast %8 : vector<256x32xf32> to vector<16x16x32xf32>
    %10 = vector.shape_cast %0 : vector<16x32xf32> to vector<16x1x32xf32>
    %11 = vector.broadcast %10 : vector<16x1x32xf32> to vector<16x16x32xf32>
    %12 = arith.addf %9, %11 : vector<16x16x32xf32>
    %cst_11 = arith.constant 0.000000e+00 : f32
    %13 = vector.broadcast %cst_11 : f32 to vector<16x16x32xf32>
    %14 = arith.maximumf %12, %13 : vector<16x16x32xf32>
    %15 = vector.broadcast %3 : vector<1x1x32xf32> to vector<16x16x32xf32>
    %16 = arith.mulf %14, %15 : vector<16x16x32xf32>
    %cst_12 = arith.constant dense<0.000000e+00> : vector<16x16xf32>
    %17 = vector.multi_reduction <add>, %16, %cst_12 [2] : vector<16x16x32xf32> to vector<16x16xf32>
    %c0_13 = arith.constant 0 : index
    %c0_14 = arith.constant 0 : index
    %18 = vector.load %arg7[%c0_13, %c0_14] : memref<16x128xf32, #tpu.memory_space<vmem>>, vector<16x16xf32>
    tpu.vector_store %arg7[%c0_13, %c0_14], %17 {strides = array<i32>} : memref<16x128xf32, #tpu.memory_space<vmem>>, vector<16x16xf32>,
    %c0_15 = arith.constant 0 : index
    %c0_16 = arith.constant 0 : index
    %19 = vector.load %arg7[%c0_15, %c0_16] : memref<16x128xf32, #tpu.memory_space<vmem>>, vector<16x128xf32>
    %cst_17 = arith.constant dense<0xFF800000> : vector<16xf32>
    %20 = vector.multi_reduction <maximumf>, %19, %cst_17 [1] : vector<16x128xf32> to vector<16xf32>
    %21 = vector.shape_cast %20 : vector<16xf32> to vector<16x1xf32>
    %22 = vector.broadcast %21 : vector<16x1xf32> to vector<16x128xf32>
    %23 = arith.subf %19, %22 : vector<16x128xf32>
    %24 = math.exp %23 : vector<16x128xf32>
    %cst_18 = arith.constant dense<0.000000e+00> : vector<16xf32>
    %25 = vector.multi_reduction <add>, %24, %cst_18 [1] : vector<16x128xf32> to vector<16xf32>
    %26 = vector.shape_cast %25 : vector<16xf32> to vector<16x1xf32>
    %27 = tpu.reciprocal %26 {approx = true} : vector<16x1xf32> -> vector<16x1xf32>
    %28 = vector.broadcast %27 : vector<16x1xf32> to vector<16x128xf32>
    %29 = arith.mulf %24, %28 : vector<16x128xf32>
    %c0_19 = arith.constant 0 : index
    %c0_20 = arith.constant 0 : index
    %30 = vector.load %arg6[%c0_19, %c0_20] : memref<16x128xf32, #tpu.memory_space<vmem>>, vector<16x128xf32>
    tpu.vector_store %arg6[%c0_19, %c0_20], %29 {strides = array<i32>} : memref<16x128xf32, #tpu.memory_space<vmem>>, vector<16x128xf32>,
    %cst_21 = arith.constant 0.000000e+00 : f32
    %31 = vector.broadcast %cst_21 : f32 to vector<16x32xf32>
    %c0_22 = arith.constant 0 : index
    %c0_23 = arith.constant 0 : index
    %c0_24 = arith.constant 0 : index
    %32 = vector.load %arg1[%c0_22, %c0_23, %c0_24] : memref<16x16x32xbf16, #tpu.memory_space<vmem>>, vector<16x16x32xbf16>
    %33 = vector.extract_strided_slice %29 {offsets = [0, 0], sizes = [16, 16], strides = [1, 1]} : vector<16x128xf32> to vector<16x16xf32>
    %34 = arith.truncf %33 : vector<16x16xf32> to vector<16x16xbf16>
    %35 = vector.shape_cast %34 : vector<16x16xbf16> to vector<16x16x1xbf16>
    %36 = vector.broadcast %35 : vector<16x16x1xbf16> to vector<16x16x32xbf16>
    %37 = arith.mulf %32, %36 : vector<16x16x32xbf16>
    %38 = arith.extf %37 : vector<16x16x32xbf16> to vector<16x16x32xf32>
    %cst_25 = arith.constant dense<0.000000e+00> : vector<16x32xf32>
    %39 = vector.multi_reduction <add>, %38, %cst_25 [1] : vector<16x16x32xf32> to vector<16x32xf32>
    %40 = arith.addf %31, %39 : vector<16x32xf32>
    %cst_26 = arith.constant 0.000000e+00 : f32
    %41 = vector.broadcast %cst_26 : f32 to vector<16x128xf32>
    %c0_27 = arith.constant 0 : index
    %c0_28 = arith.constant 0 : index
    %42 = vector.load %arg8[%c0_27, %c0_28] : memref<16x128xf32, #tpu.memory_space<vmem>>, vector<16x128xf32>
    tpu.vector_store %arg8[%c0_27, %c0_28], %41 {strides = array<i32>} : memref<16x128xf32, #tpu.memory_space<vmem>>, vector<16x128xf32>,
    %c0_29 = arith.constant 0 : index
    %c0_30 = arith.constant 0 : index
    %43 = vector.load %arg8[%c0_29, %c0_30] : memref<16x128xf32, #tpu.memory_space<vmem>>, vector<16x32xf32>
    tpu.vector_store %arg8[%c0_29, %c0_30], %40 {strides = array<i32>} : memref<16x128xf32, #tpu.memory_space<vmem>>, vector<16x32xf32>,
    %c0_31 = arith.constant 0 : index
    %c0_32 = arith.constant 0 : index
    %44 = vector.load %arg8[%c0_31, %c0_32] : memref<16x128xf32, #tpu.memory_space<vmem>>, vector<16x128xf32>
    %c0_33 = arith.constant 0 : index
    %c0_34 = arith.constant 0 : index
    %45 = vector.load %arg5[%c0_33, %c0_34] : memref<16x128xf32, #tpu.memory_space<vmem>>, vector<16x128xf32>
    tpu.vector_store %arg5[%c0_33, %c0_34], %44 {strides = array<i32>} : memref<16x128xf32, #tpu.memory_space<vmem>>, vector<16x128xf32>,
    return
  }
  func.func @transform_0(%arg0: i32) -> (i32, i32, i32) {
    %c0_i32 = arith.constant 0 : i32
    %c0_i32_0 = arith.constant 0 : i32
    %c0_i32_1 = arith.constant 0 : i32
    return %arg0, %c0_i32, %c0_i32_0 : i32, i32, i32
  }
  func.func @transform_1(%arg0: i32) -> (i32, i32) {
    %c0_i32 = arith.constant 0 : i32
    %c0_i32_0 = arith.constant 0 : i32
    return %arg0, %c0_i32 : i32, i32
  }
  func.func @transform_2(%arg0: i32) -> (i32, i32) {
    %c0_i32 = arith.constant 0 : i32
    %c0_i32_0 = arith.constant 0 : i32
    %c0_i32_1 = arith.constant 0 : i32
    return %c0_i32, %c0_i32_0 : i32, i32
  }
  func.func @transform_3(%arg0: i32) -> (i32, i32) {
    %c0_i32 = arith.constant 0 : i32
    %c0_i32_0 = arith.constant 0 : i32
    %c0_i32_1 = arith.constant 0 : i32
    return %c0_i32, %c0_i32_0 : i32, i32
  }
  func.func @transform_4(%arg0: i32) -> (i32, i32) {
    %c0_i32 = arith.constant 0 : i32
    %c0_i32_0 = arith.constant 0 : i32
    return %arg0, %c0_i32 : i32, i32
  }
  func.func @transform_5(%arg0: i32) -> (i32, i32) {
    %c0_i32 = arith.constant 0 : i32
    %c0_i32_0 = arith.constant 0 : i32
    return %arg0, %c0_i32 : i32, i32
  }
}

</mosaic_0001>

<llo_original>
// kernel: tpu_custom_call.1
$region0: #{tpu_custom_call.1}
  #allocation0 [shape = 'u32[]', space=smem, size = 0x4, offset = 0x4, fixed_abs, tag = 'smem constant byte address 0x4 - core index']
  #allocation1 [shape = 'u32[144,128]{1,0:T(1,128)}', space=vmem, size = 0x12000, scoped, tag = 'internal scratch']
  #allocation2 [shape = 'f32[16,128]{1,0:T(8,128)}', space=vmem, size = 0x2000, scoped, tag = 'scratch operand']
  #allocation3 [shape = 'f32[16,128]{1,0:T(8,128)}', space=vmem, size = 0x2000, scoped, tag = 'scratch operand']
  %s0 = inlined_call_operand.hbm [shape: bf16[32,16,32], index: 0, kind: input, shape index: {}]
  %s1 = inlined_call_operand.hbm [shape: f32[32,32], index: 1, kind: input, shape index: {}]
  %s2 = inlined_call_operand.hbm [shape: bf16[32,32], index: 2, kind: input, shape index: {}]
  %s3 = inlined_call_operand.hbm [shape: f32[1,32], index: 3, kind: input, shape index: {}]
  %s4 = inlined_call_operand.hbm [shape: f32[32,128], index: 4, kind: output, shape index: {0}]
  %s5 = inlined_call_operand.hbm [shape: f32[32,128], index: 5, kind: output, shape index: {1}]
  %6 = xla_tuple %s4, %s5
  %s7 = sld [smem:[#allocation0]]
  $region73: #{tpu_custom_call.1} parent=0
    _
  %s9 = ssub.s32 1, %s7
  %s10 = scalar_select 0, %s9, %s7
  $region1: #{tpu_custom_call.1} parent=0
    #allocation4 [shape = 'u8[131072]{0}', space=vmem, size = 0x20000, scoped, tag = 'input window, operand 0']
    #allocation5 [shape = 's32[2]{0}', space=sflag, size = 0x8, scoped, tag = 'scoped memory for tpu_custom_call.1']
    #allocation6 [shape = 's32[2]{0}', space=sflag, size = 0x8, scoped, tag = 'scoped memory for tpu_custom_call.1']
    #allocation7 [shape = 'u8[16384]{0}', space=vmem, size = 0x4000, scoped, tag = 'input window, operand 1']
    #allocation8 [shape = 's32[2]{0}', space=sflag, size = 0x8, scoped, tag = 'scoped memory for tpu_custom_call.1']
    #allocation9 [shape = 'u8[8192]{0}', space=vmem, size = 0x2000, scoped, tag = 'input window, operand 2, single buffered']
    #allocation10 [shape = 'u8[512]{0}', space=vmem, size = 0x400, scoped, tag = 'input window, operand 3, single buffered']
    #allocation11 [shape = 's32[1]{0}', space=sflag, size = 0x4, scoped, tag = 'scoped memory for tpu_custom_call.1']
    #allocation12 [shape = 'u8[16384]{0}', space=vmem, size = 0x4000, scoped, tag = 'output window, operand 0']
    #allocation13 [shape = 'u8[16384]{0}', space=vmem, size = 0x4000, scoped, tag = 'output window, operand 1']
    #allocation14 [shape = 's32[2]{0}', space=sflag, size = 0x8, scoped, tag = 'scoped memory for tpu_custom_call.1']
    %11 = vsyncpa [#allocation5], 0
    %s12 = scalar_lea.sflag [#allocation5], 1
    %13 = vsyncpa %s12, 0
    %14 = vsyncpa [#allocation8], 0
    %s15 = scalar_lea.sflag [#allocation8], 1
    %16 = vsyncpa %s15, 0
    %17 = vsyncpa [#allocation11], 0
    %18 = vsyncpa [#allocation6], 0
    %s19 = scalar_lea.sflag [#allocation6], 1
    %20 = vsyncpa %s19, 0
    %21 = vsyncpa [#allocation14], 0
    %s22 = scalar_lea.sflag [#allocation14], 1
    %23 = vsyncpa %s22, 0
    loop: start=0, step=1, limit=4
    $region2: #{tpu_custom_call.1} parent=1 // loop_pre_header
      _
    $region3: #{tpu_custom_call.1} parent=1 // loop_header
      %s25 = sphi 0, %s29
      %p26 = scmp.ge.s32.totalorder %s25, 4
      %s35 = sphi 0, %s37
      %s38 = sphi 0, %s35
      %s39 = sphi 0, %s38
      %s55 = sphi 0, %s39
      %s61 = sphi 0, %s63
      %s64 = sphi 0, %s61
      %s65 = sphi 0, %s64
      %s81 = sphi 0, %s65
      %s85 = sphi 0, %s85
      %s87 = sphi 0, %s85
      %s88 = sphi 0, %s87
      %s102 = sphi 0, %s88
      %s106 = sphi 0, %s106
      %s108 = sphi 0, %s106
      %s109 = sphi 0, %s108
      %s123 = sphi 0, %s109
      %s129 = sphi 0, %s131
      %s132 = sphi 0, %s129
      %s133 = sphi 0, %s132
      %s149 = sphi 0, %s133
      %s155 = sphi 0, %s157
      %s158 = sphi 0, %s155
      %s159 = sphi 0, %s158
      %s175 = sphi 0, %s159
    $region4: #{tpu_custom_call.1} parent=1 // loop_header_branch
      %28 = sbr.rel (%p26) target = $region8
    $region5: #{tpu_custom_call.1} parent=1 // loop_body
      %s30 = ssub.s32 %s25, 1
      %s31 = ssub.s32 %s25, 2
      %s32 = sadd.s32 %s25, 1
      %s33 = ssub.s32 %s25, %s32
      %p34 = scmp.eq.s32.totalorder %s33, 0
      %s36 = sadd.s32 %s35, 1
      %s37 = scalar_select %p34, %s35, %s36
      %p40 = pneg %p34
      %p41 = scmp.eq.s32.totalorder %s25, 1
      %p42 = por %p40, %p41
      %p43 = scmp.ne.s32.totalorder %s35, %s38
      %p44 = scmp.eq.s32.totalorder %s25, 0
      %p45 = por %p43, %p44
      %p46 = scmp.ne.s32.totalorder %s35, %s38
      %p47 = scmp.eq.s32.totalorder %s30, 1
      %p48 = por %p46, %p47
      %p49 = scmp.ne.s32.totalorder %s38, %s39
      %p50 = scmp.eq.s32.totalorder %s30, 0
      %p51 = por %p49, %p50
      %p52 = scmp.ne.s32.totalorder %s38, %s39
      %p53 = scmp.eq.s32.totalorder %s31, 1
      %p54 = por %p52, %p53
      %p56 = scmp.ne.s32.totalorder %s39, %s55
      %p57 = scmp.eq.s32.totalorder %s31, 0
      %p58 = por %p56, %p57
      %s59 = ssub.s32 %s25, %s32
      %p60 = scmp.eq.s32.totalorder %s59, 0
      %s62 = sadd.s32 %s61, 1
      %s63 = scalar_select %p60, %s61, %s62
      %p66 = pneg %p60
      %p67 = scmp.eq.s32.totalorder %s25, 1
      %p68 = por %p66, %p67
      %p69 = scmp.ne.s32.totalorder %s61, %s64
      %p70 = scmp.eq.s32.totalorder %s25, 0
      %p71 = por %p69, %p70
      %p72 = scmp.ne.s32.totalorder %s61, %s64
      %p73 = scmp.eq.s32.totalorder %s30, 1
      %p74 = por %p72, %p73
      %p75 = scmp.ne.s32.totalorder %s64, %s65
      %p76 = scmp.eq.s32.totalorder %s30, 0
      %p77 = por %p75, %p76
      %p78 = scmp.ne.s32.totalorder %s64, %s65
      %p79 = scmp.eq.s32.totalorder %s31, 1
      %p80 = por %p78, %p79
      %p82 = scmp.ne.s32.totalorder %s65, %s81
      %p83 = scmp.eq.s32.totalorder %s31, 0
      %p84 = por %p82, %p83
      %s86 = sadd.s32 %s85, 1
      %p89 = scmp.eq.s32.totalorder %s25, 1
      %p90 = scmp.ne.s32.totalorder %s85, %s87
      %p91 = scmp.eq.s32.totalorder %s25, 0
      %p92 = por %p90, %p91
      %p93 = scmp.ne.s32.totalorder %s85, %s87
      %p94 = scmp.eq.s32.totalorder %s30, 1
      %p95 = por %p93, %p94
      %p96 = scmp.ne.s32.totalorder %s87, %s88
      %p97 = scmp.eq.s32.totalorder %s30, 0
      %p98 = por %p96, %p97
      %p99 = scmp.ne.s32.totalorder %s87, %s88
      %p100 = scmp.eq.s32.totalorder %s31, 1
      %p101 = por %p99, %p100
      %p103 = scmp.ne.s32.totalorder %s88, %s102
      %p104 = scmp.eq.s32.totalorder %s31, 0
      %p105 = por %p103, %p104
      %s107 = sadd.s32 %s106, 1
      %p110 = scmp.eq.s32.totalorder %s25, 1
      %p111 = scmp.ne.s32.totalorder %s106, %s108
      %p112 = scmp.eq.s32.totalorder %s25, 0
      %p113 = por %p111, %p112
      %p114 = scmp.ne.s32.totalorder %s106, %s108
      %p115 = scmp.eq.s32.totalorder %s30, 1
      %p116 = por %p114, %p115
      %p117 = scmp.ne.s32.totalorder %s108, %s109
      %p118 = scmp.eq.s32.totalorder %s30, 0
      %p119 = por %p117, %p118
      %p120 = scmp.ne.s32.totalorder %s108, %s109
      %p121 = scmp.eq.s32.totalorder %s31, 1
      %p122 = por %p120, %p121
      %p124 = scmp.ne.s32.totalorder %s109, %s123
      %p125 = scmp.eq.s32.totalorder %s31, 0
      %p126 = por %p124, %p125
      %s127 = ssub.s32 %s25, %s32
      %p128 = scmp.eq.s32.totalorder %s127, 0
      %s130 = sadd.s32 %s129, 1
      %s131 = scalar_select %p128, %s129, %s130
      %p134 = pneg %p128
      %p135 = scmp.eq.s32.totalorder %s25, 1
      %p136 = por %p134, %p135
      %p137 = scmp.ne.s32.totalorder %s129, %s132
      %p138 = scmp.eq.s32.totalorder %s25, 0
      %p139 = por %p137, %p138
      %p140 = scmp.ne.s32.totalorder %s129, %s132
      %p141 = scmp.eq.s32.totalorder %s30, 1
      %p142 = por %p140, %p141
      %p143 = scmp.ne.s32.totalorder %s132, %s133
      %p144 = scmp.eq.s32.totalorder %s30, 0
      %p145 = por %p143, %p144
      %p146 = scmp.ne.s32.totalorder %s132, %s133
      %p147 = scmp.eq.s32.totalorder %s31, 1
      %p148 = por %p146, %p147
      %p150 = scmp.ne.s32.totalorder %s133, %s149
      %p151 = scmp.eq.s32.totalorder %s31, 0
      %p152 = por %p150, %p151
      %s153 = ssub.s32 %s25, %s32
      %p154 = scmp.eq.s32.totalorder %s153, 0
      %s156 = sadd.s32 %s155, 1
      %s157 = scalar_select %p154, %s155, %s156
      %p160 = pneg %p154
      %p161 = scmp.eq.s32.totalorder %s25, 1
      %p162 = por %p160, %p161
      %p163 = scmp.ne.s32.totalorder %s155, %s158
      %p164 = scmp.eq.s32.totalorder %s25, 0
      %p165 = por %p163, %p164
      %p166 = scmp.ne.s32.totalorder %s155, %s158
      %p167 = scmp.eq.s32.totalorder %s30, 1
      %p168 = por %p166, %p167
      %p169 = scmp.ne.s32.totalorder %s158, %s159
      %p170 = scmp.eq.s32.totalorder %s30, 0
      %p171 = por %p169, %p170
      %p172 = scmp.ne.s32.totalorder %s158, %s159
      %p173 = scmp.eq.s32.totalorder %s31, 1
      %p174 = por %p172, %p173
      %p176 = scmp.ne.s32.totalorder %s159, %s175
      %p177 = scmp.eq.s32.totalorder %s31, 0
      %p178 = por %p176, %p177
      %p179 = scmp.le.s32.totalorder 1, %s25
      %p180 = scmp.lt.s32.totalorder %s25, 3
      %p181 = pnand %p179, %p180
      %p182 = pneg %p181
      // Predicated region
      $region9: #{tpu_custom_call.1} parent=5 // pred_check
        _
      $region10: #{tpu_custom_call.1} parent=5 // pred_check_branch
        %184 = sbr.rel (%p181) target = $region12
      $region11: #{tpu_custom_call.1} parent=5 // pred_region
        %s185 = ssub.s32 %s25, 1
        // Predicated region
        $region13: #{tpu_custom_call.1} parent=11 // pred_check
          %p186 = pneg %p98
        $region14: #{tpu_custom_call.1} parent=11 // pred_check_branch
          %188 = sbr.rel (%p186) target = $region16
        $region15: #{tpu_custom_call.1} parent=11 // pred_region
          %s190 = ssub.s32 256, 256
          %191 = vsyncadd [#allocation8], %s190
          %s192 = sshll.u32 [#allocation9], 4
          %s193 = int_to_ptr.vmem [resolvable:$true] %s192
          %198 = dma.hbm_to_vmem [thread:$0]  %s2, 256, %s193, [#allocation8], 64, 64, 4
        $region16: #{tpu_custom_call.1} parent=11 // pred_fallthru
          _
        // Predicated region
        $region17: #{tpu_custom_call.1} parent=11 // pred_check
          %p199 = pneg %p119
        $region18: #{tpu_custom_call.1} parent=11 // pred_check_branch
          %201 = sbr.rel (%p199) target = $region20
        $region19: #{tpu_custom_call.1} parent=11 // pred_region
          %s203 = ssub.s32 16, 16
          %204 = vsyncadd [#allocation11], %s203
          %s206 = sshll.u32 [#allocation10], 4
          %s207 = int_to_ptr.vmem [resolvable:$true] %s206
          %209 = dma.hbm_to_vmem [thread:$0]  %s3, 16, %s207, [#allocation11]
        $region20: #{tpu_custom_call.1} parent=11 // pred_fallthru
          _
      $region12: #{tpu_custom_call.1} parent=5 // pred_fallthru
        _
      %p210 = scmp.lt.s32.totalorder %s25, 2
      // Predicated region
      $region21: #{tpu_custom_call.1} parent=5 // pred_check
        %p211 = pneg %p210
      $region22: #{tpu_custom_call.1} parent=5 // pred_check_branch
        %213 = sbr.rel (%p211) target = $region24
      $region23: #{tpu_custom_call.1} parent=5 // pred_region
        // Predicated region
        $region25: #{tpu_custom_call.1} parent=23 // pred_check
          %p214 = pneg %p45
        $region26: #{tpu_custom_call.1} parent=23 // pred_check_branch
          %216 = sbr.rel (%p214) target = $region28
        $region27: #{tpu_custom_call.1} parent=23 // pred_region
          %s217 = sand.u32 %s35, 1
          %s218 = scalar_lea.sflag [#allocation5], %s217
          %s219 = sand.u32 %s35, 1
          %s220 = smul.addr %s219, 128
          %s221 = scalar_lea.vmem [#allocation4], %s220
          %s222 = smul.u32 16, %s25
          %s224 = ssub.s32 2048, 2048
          %225 = vsyncadd %s218, %s224
          %s226 = smul.addr %s222, 2
          %s227 = smul.addr %s226, 64
          %s228 = scalar_lea.hbm %s0, %s227
          %s229 = sshll.u32 %s221, 4
          %s230 = int_to_ptr.vmem [resolvable:$true] %s229
          %235 = dma.hbm_to_vmem [thread:$0]  %s228, 2048, %s230, %s218, 64, 64, 4
        $region28: #{tpu_custom_call.1} parent=23 // pred_fallthru
          _
        // Predicated region
        $region29: #{tpu_custom_call.1} parent=23 // pred_check
          %p236 = pneg %p71
        $region30: #{tpu_custom_call.1} parent=23 // pred_check_branch
          %238 = sbr.rel (%p236) target = $region32
        $region31: #{tpu_custom_call.1} parent=23 // pred_region
          %s239 = sand.u32 %s25, 1
          %s240 = scalar_lea.sflag [#allocation8], %s239
          %s241 = sand.u32 %s61, 1
          %s242 = smul.addr %s241, 16
          %s243 = scalar_lea.vmem [#allocation7], %s242
          %s244 = smul.u32 2, %s25
          %s246 = ssub.s32 256, 256
          %247 = vsyncadd %s240, %s246
          %s248 = smul.addr %s244, 128
          %s249 = scalar_lea.hbm %s1, %s248
          %s250 = sshll.u32 %s243, 4
          %s251 = int_to_ptr.vmem [resolvable:$true] %s250
          %256 = dma.hbm_to_vmem [thread:$0]  %s249, 256, %s251, %s240, 128, 128, 8
        $region32: #{tpu_custom_call.1} parent=23 // pred_fallthru
          _
      $region24: #{tpu_custom_call.1} parent=5 // pred_fallthru
        _
      %p257 = scmp.le.s32.totalorder 1, %s25
      %p258 = scmp.lt.s32.totalorder %s25, 3
      %p259 = pnand %p257, %p258
      %p260 = pneg %p259
      // Predicated region
      $region33: #{tpu_custom_call.1} parent=5 // pred_check
        _
      $region34: #{tpu_custom_call.1} parent=5 // pred_check_branch
        %262 = sbr.rel (%p259) target = $region36
      $region35: #{tpu_custom_call.1} parent=5 // pred_region
        %s263 = ssub.s32 %s25, 1
        %s264 = sand.u32 %s38, 1
        %s265 = scalar_lea.sflag [#allocation5], %s264
        %s266 = sand.u32 %s38, 1
        %s267 = smul.addr %s266, 128
        %s268 = scalar_lea.vmem [#allocation4], %s267
        // Predicated region
        $region37: #{tpu_custom_call.1} parent=35 // pred_check
          %p269 = pneg %p51
        $region38: #{tpu_custom_call.1} parent=35 // pred_check_branch
          %271 = sbr.rel (%p269) target = $region40
        $region39: #{tpu_custom_call.1} parent=35 // pred_region
          %272 = dma.done %s265, 2048
        $region40: #{tpu_custom_call.1} parent=35 // pred_fallthru
          _
        %s273 = sand.u32 %s30, 1
        %s274 = scalar_lea.sflag [#allocation8], %s273
        %s275 = sand.u32 %s64, 1
        %s276 = smul.addr %s275, 16
        %s277 = scalar_lea.vmem [#allocation7], %s276
        // Predicated region
        $region41: #{tpu_custom_call.1} parent=35 // pred_check
          %p278 = pneg %p77
        $region42: #{tpu_custom_call.1} parent=35 // pred_check_branch
          %280 = sbr.rel (%p278) target = $region44
        $region43: #{tpu_custom_call.1} parent=35 // pred_region
          %281 = dma.done %s274, 256
        $region44: #{tpu_custom_call.1} parent=35 // pred_fallthru
          _
        // Predicated region
        $region45: #{tpu_custom_call.1} parent=35 // pred_check
          %p282 = pneg %p98
        $region46: #{tpu_custom_call.1} parent=35 // pred_check_branch
          %284 = sbr.rel (%p282) target = $region48
        $region47: #{tpu_custom_call.1} parent=35 // pred_region
          %285 = dma.done [#allocation8], 256
        $region48: #{tpu_custom_call.1} parent=35 // pred_fallthru
          _
        // Predicated region
        $region49: #{tpu_custom_call.1} parent=35 // pred_check
          %p286 = pneg %p119
        $region50: #{tpu_custom_call.1} parent=35 // pred_check_branch
          %288 = sbr.rel (%p286) target = $region52
        $region51: #{tpu_custom_call.1} parent=35 // pred_region
          %289 = dma.done [#allocation11], 16
        $region52: #{tpu_custom_call.1} parent=35 // pred_fallthru
          _
        %s290 = sand.u32 %s38, 1
        %s291 = scalar_lea.sflag [#allocation5], %s290
        %s292 = sand.u32 %s38, 1
        %s293 = smul.addr %s292, 128
        %s294 = scalar_lea.vmem [#allocation4], %s293
        %p295 = pneg %p51
        %p296 = pneg %p48
        %s297 = sand.u32 %s30, 1
        %s298 = scalar_lea.sflag [#allocation8], %s297
        %s299 = sand.u32 %s64, 1
        %s300 = smul.addr %s299, 16
        %s301 = scalar_lea.vmem [#allocation7], %s300
        %p302 = pneg %p77
        %p303 = pneg %p74
        %p304 = pneg %p98
        %p305 = pneg %p95
        %p306 = pneg %p119
        %p307 = pneg %p116
        %p308 = pneg %p145
        %p309 = pneg %p142
        %s310 = sand.u32 %s132, 1
        %s311 = scalar_lea.sflag [#allocation6], %s310
        %s312 = sand.u32 %s132, 1
        %s313 = smul.addr %s312, 16
        %s314 = scalar_lea.vmem [#allocation12], %s313
        %p315 = pneg %p171
        %p316 = pneg %p168
        %s317 = sand.u32 %s158, 1
        %s318 = scalar_lea.sflag [#allocation14], %s317
        %s319 = sand.u32 %s158, 1
        %s320 = smul.addr %s319, 16
        %s321 = scalar_lea.vmem [#allocation13], %s320
        %s322 = smul.u32 16, %s30
        %s323 = smul.u32 2, %s30
        %s324 = smul.u32 2, %s30
        %s325 = smul.u32 2, %s30
        %v327 = vld [vmem:[%s277] sm:$0xff]
        %v328 = vld [vmem:[%s277 + $0x8] sm:$0xff]
        %v329 = vld [vmem:[#allocation9] sm:$0xf]
        %v330 = vld [vmem:[#allocation9 + $0x4] sm:$0xf]
        %v331 = vld [vmem:[#allocation9 + $0x8] sm:$0xf]
        %v332 = vld [vmem:[#allocation9 + $0xc] sm:$0xf]
        %v333 = vld [vmem:[#allocation10] sm:$0x1]
        %334 = vst [vmem:[#allocation2] sm:$0xff] -1e+30
        %335 = vst [vmem:[#allocation2 + $0x8] sm:$0xff] -1e+30
        %v336 = vld [vmem:[%s268] sm:$0xf]
        %v337 = vld [vmem:[%s268 + $0x4] sm:$0xf]
        %v338 = vld [vmem:[%s268 + $0x8] sm:$0xf]
        %v339 = vld [vmem:[%s268 + $0xc] sm:$0xf]
        %v340 = vld [vmem:[%s268 + $0x10] sm:$0xf]
        %v341 = vld [vmem:[%s268 + $0x14] sm:$0xf]
        %v342 = vld [vmem:[%s268 + $0x18] sm:$0xf]
        %v343 = vld [vmem:[%s268 + $0x1c] sm:$0xf]
        %v344 = vld [vmem:[%s268 + $0x20] sm:$0xf]
        %v345 = vld [vmem:[%s268 + $0x24] sm:$0xf]
        %v346 = vld [vmem:[%s268 + $0x28] sm:$0xf]
        %v347 = vld [vmem:[%s268 + $0x2c] sm:$0xf]
        %v348 = vld [vmem:[%s268 + $0x30] sm:$0xf]
        %v349 = vld [vmem:[%s268 + $0x34] sm:$0xf]
        %v350 = vld [vmem:[%s268 + $0x38] sm:$0xf]
        %v351 = vld [vmem:[%s268 + $0x3c] sm:$0xf]
        %v352 = vld [vmem:[%s268 + $0x40] sm:$0xf]
        %v353 = vld [vmem:[%s268 + $0x44] sm:$0xf]
        %v354 = vld [vmem:[%s268 + $0x48] sm:$0xf]
        %v355 = vld [vmem:[%s268 + $0x4c] sm:$0xf]
        %v356 = vld [vmem:[%s268 + $0x50] sm:$0xf]
        %v357 = vld [vmem:[%s268 + $0x54] sm:$0xf]
        %v358 = vld [vmem:[%s268 + $0x58] sm:$0xf]
        %v359 = vld [vmem:[%s268 + $0x5c] sm:$0xf]
        %v360 = vld [vmem:[%s268 + $0x60] sm:$0xf]
        %v361 = vld [vmem:[%s268 + $0x64] sm:$0xf]
        %v362 = vld [vmem:[%s268 + $0x68] sm:$0xf]
        %v363 = vld [vmem:[%s268 + $0x6c] sm:$0xf]
        %v364 = vld [vmem:[%s268 + $0x70] sm:$0xf]
        %v365 = vld [vmem:[%s268 + $0x74] sm:$0xf]
        %v366 = vld [vmem:[%s268 + $0x78] sm:$0xf]
        %v367 = vld [vmem:[%s268 + $0x7c] sm:$0xf]
        %v400 = vunpack.c.l.b16 %v336
        %v401 = vunpack.c.l.b16 %v337
        %v402 = vunpack.c.l.b16 %v338
        %v403 = vunpack.c.l.b16 %v339
        %v404 = vunpack.c.l.b16 %v340
        %v405 = vunpack.c.l.b16 %v341
        %v406 = vunpack.c.l.b16 %v342
        %v407 = vunpack.c.l.b16 %v343
        %v408 = vunpack.c.l.b16 %v344
        %v409 = vunpack.c.l.b16 %v345
        %v410 = vunpack.c.l.b16 %v346
        %v411 = vunpack.c.l.b16 %v347
        %v412 = vunpack.c.l.b16 %v348
        %v413 = vunpack.c.l.b16 %v349
        %v414 = vunpack.c.l.b16 %v350
        %v415 = vunpack.c.l.b16 %v351
        %v416 = vunpack.c.l.b16 %v352
        %v417 = vunpack.c.l.b16 %v353
        %v418 = vunpack.c.l.b16 %v354
        %v419 = vunpack.c.l.b16 %v355
        %v420 = vunpack.c.l.b16 %v356
        %v421 = vunpack.c.l.b16 %v357
        %v422 = vunpack.c.l.b16 %v358
        %v423 = vunpack.c.l.b16 %v359
        %v424 = vunpack.c.l.b16 %v360
        %v425 = vunpack.c.l.b16 %v361
        %v426 = vunpack.c.l.b16 %v362
        %v427 = vunpack.c.l.b16 %v363
        %v428 = vunpack.c.l.b16 %v364
        %v429 = vunpack.c.l.b16 %v365
        %v430 = vunpack.c.l.b16 %v366
        %v431 = vunpack.c.l.b16 %v367
        %v432 = vpack.c.b16 %v401, %v400
        %v433 = vpack.c.b16 %v403, %v402
        %v434 = vpack.c.b16 %v405, %v404
        %v435 = vpack.c.b16 %v407, %v406
        %v436 = vpack.c.b16 %v409, %v408
        %v437 = vpack.c.b16 %v411, %v410
        %v438 = vpack.c.b16 %v413, %v412
        %v439 = vpack.c.b16 %v415, %v414
        %v440 = vpack.c.b16 %v417, %v416
        %v441 = vpack.c.b16 %v419, %v418
        %v442 = vpack.c.b16 %v421, %v420
        %v443 = vpack.c.b16 %v423, %v422
        %v444 = vpack.c.b16 %v425, %v424
        %v445 = vpack.c.b16 %v427, %v426
        %v446 = vpack.c.b16 %v429, %v428
        %v447 = vpack.c.b16 %v431, %v430
        %v452 = vunpack.c.l.b16 %v329
        %v453 = vunpack.c.l.b16 %v330
        %v454 = vunpack.c.l.b16 %v331
        %v455 = vunpack.c.l.b16 %v332
        %v456 = vpack.c.b16 %v453, %v452
        %v457 = vpack.c.b16 %v455, %v454
        %vm460 = vcmask 261120
        %v462 = vsel %vm460, %v432, 0
        %v465 = vsel %vm460, %v433, 0
        %v468 = vsel %vm460, %v434, 0
        %v471 = vsel %vm460, %v435, 0
        %v474 = vsel %vm460, %v436, 0
        %v477 = vsel %vm460, %v437, 0
        %v480 = vsel %vm460, %v438, 0
        %v483 = vsel %vm460, %v439, 0
        %v486 = vsel %vm460, %v440, 0
        %v489 = vsel %vm460, %v441, 0
        %v492 = vsel %vm460, %v442, 0
        %v495 = vsel %vm460, %v443, 0
        %v498 = vsel %vm460, %v444, 0
        %v501 = vsel %vm460, %v445, 0
        %v504 = vsel %vm460, %v446, 0
        %v507 = vsel %vm460, %v447, 0
        %509 = vmatprep.subr.bf16.mxu0 0
        %510 = vmatpush1.bf16.msra.mxu0 %v456
        %511 = vmatprep.subr.bf16.mxu0 0
        %512 = vmatpush1.bf16.msra.mxu0 %v457
        %513 = vmatprep.subr.bf16.mxu0 0
        %514 = vmatpush1.bf16.msra.mxu0 0
        %515 = vmatprep.subr.bf16.mxu0 0
        %516 = vmatpush1.bf16.msra.mxu0 0
        %517 = vmatprep.subr.bf16.mxu0 0
        %518 = vmatpush1.bf16.msra.mxu0 0
        %519 = vmatprep.subr.bf16.mxu0 0
        %520 = vmatpush1.bf16.msra.mxu0 0
        %521 = vmatprep.subr.bf16.mxu0 0
        %522 = vmatpush1.bf16.msra.mxu0 0
        %523 = vmatprep.subr.bf16.mxu0 0
        %524 = vmatpush1.bf16.msra.mxu0 0
        %525 = vmatprep.subr.bf16.mxu0 0
        %526 = vmatpush1.bf16.msra.mxu0 0
        %527 = vmatprep.subr.bf16.mxu0 0
        %528 = vmatpush1.bf16.msra.mxu0 0
        %529 = vmatprep.subr.bf16.mxu0 0
        %530 = vmatpush1.bf16.msra.mxu0 0
        %531 = vmatprep.subr.bf16.mxu0 0
        %532 = vmatpush1.bf16.msra.mxu0 0
        %533 = vmatprep.subr.bf16.mxu0 0
        %534 = vmatpush1.bf16.msra.mxu0 0
        %535 = vmatprep.subr.bf16.mxu0 0
        %536 = vmatpush1.bf16.msra.mxu0 0
        %537 = vmatprep.subr.bf16.mxu0 0
        %538 = vmatpush1.bf16.msra.mxu0 0
        %539 = vmatprep.subr.bf16.mxu0 0
        %540 = vmatpush1.bf16.msra.mxu0 0
        %541 = vmatprep.mubr.bf16.mxu0 0
        %542 = vmatmul.mubr.bf16.gmra.mrb[0].mxu0 %v462
        %v543 = vpop.f32.mrb[0].mxu0
        %v544 = vadd.f32 0.0, %v543
        %v545 = vpop.f32.mrb[0].mxu0
        %v546 = vpop.f32.mrb[0].mxu0
        %v547 = vadd.f32 0.0, %v546
        %v548 = vpop.f32.mrb[0].mxu0
        %549 = vmatprep.mubr.bf16.mxu0 0
        %550 = vmatmul.mubr.bf16.gmra.mrb[0].mxu0 %v465
        %v551 = vpop.f32.mrb[0].mxu0
        %v552 = vadd.f32 0.0, %v551
        %v553 = vpop.f32.mrb[0].mxu0
        %v554 = vpop.f32.mrb[0].mxu0
        %v555 = vadd.f32 0.0, %v554
        %v556 = vpop.f32.mrb[0].mxu0
        %557 = vmatprep.mubr.bf16.mxu0 0
        %558 = vmatmul.mubr.bf16.gmra.mrb[0].mxu0 %v468
        %v559 = vpop.f32.mrb[0].mxu0
        %v560 = vadd.f32 0.0, %v559
        %v561 = vpop.f32.mrb[0].mxu0
        %v562 = vpop.f32.mrb[0].mxu0
        %v563 = vadd.f32 0.0, %v562
        %v564 = vpop.f32.mrb[0].mxu0
        %565 = vmatprep.mubr.bf16.mxu0 0
        %566 = vmatmul.mubr.bf16.gmra.mrb[0].mxu0 %v471
        %v567 = vpop.f32.mrb[0].mxu0
        %v568 = vadd.f32 0.0, %v567
        %v569 = vpop.f32.mrb[0].mxu0
        %v570 = vpop.f32.mrb[0].mxu0
        %v571 = vadd.f32 0.0, %v570
        %v572 = vpop.f32.mrb[0].mxu0
        %573 = vmatprep.mubr.bf16.mxu0 0
        %574 = vmatmul.mubr.bf16.gmra.mrb[0].mxu0 %v474
        %v575 = vpop.f32.mrb[0].mxu0
        %v576 = vadd.f32 0.0, %v575
        %v577 = vpop.f32.mrb[0].mxu0
        %v578 = vpop.f32.mrb[0].mxu0
        %v579 = vadd.f32 0.0, %v578
        %v580 = vpop.f32.mrb[0].mxu0
        %581 = vmatprep.mubr.bf16.mxu0 0
        %582 = vmatmul.mubr.bf16.gmra.mrb[0].mxu0 %v477
        %v583 = vpop.f32.mrb[0].mxu0
        %v584 = vadd.f32 0.0, %v583
        %v585 = vpop.f32.mrb[0].mxu0
        %v586 = vpop.f32.mrb[0].mxu0
        %v587 = vadd.f32 0.0, %v586
        %v588 = vpop.f32.mrb[0].mxu0
        %589 = vmatprep.mubr.bf16.mxu0 0
        %590 = vmatmul.mubr.bf16.gmra.mrb[0].mxu0 %v480
        %v591 = vpop.f32.mrb[0].mxu0
        %v592 = vadd.f32 0.0, %v591
        %v593 = vpop.f32.mrb[0].mxu0
        %v594 = vpop.f32.mrb[0].mxu0
        %v595 = vadd.f32 0.0, %v594
        %v596 = vpop.f32.mrb[0].mxu0
        %597 = vmatprep.mubr.bf16.mxu0 0
        %598 = vmatmul.mubr.bf16.gmra.mrb[0].mxu0 %v483
        %v599 = vpop.f32.mrb[0].mxu0
        %v600 = vadd.f32 0.0, %v599
        %v601 = vpop.f32.mrb[0].mxu0
        %v602 = vpop.f32.mrb[0].mxu0
        %v603 = vadd.f32 0.0, %v602
        %v604 = vpop.f32.mrb[0].mxu0
        %605 = vmatprep.mubr.bf16.mxu0 0
        %606 = vmatmul.mubr.bf16.gmra.mrb[0].mxu0 %v486
        %v607 = vpop.f32.mrb[0].mxu0
        %v608 = vadd.f32 0.0, %v607
        %v609 = vpop.f32.mrb[0].mxu0
        %v610 = vpop.f32.mrb[0].mxu0
        %v611 = vadd.f32 0.0, %v610
        %v612 = vpop.f32.mrb[0].mxu0
        %613 = vmatprep.mubr.bf16.mxu0 0
        %614 = vmatmul.mubr.bf16.gmra.mrb[0].mxu0 %v489
        %v615 = vpop.f32.mrb[0].mxu0
        %v616 = vadd.f32 0.0, %v615
        %v617 = vpop.f32.mrb[0].mxu0
        %v618 = vpop.f32.mrb[0].mxu0
        %v619 = vadd.f32 0.0, %v618
        %v620 = vpop.f32.mrb[0].mxu0
        %621 = vmatprep.mubr.bf16.mxu0 0
        %622 = vmatmul.mubr.bf16.gmra.mrb[0].mxu0 %v492
        %v623 = vpop.f32.mrb[0].mxu0
        %v624 = vadd.f32 0.0, %v623
        %v625 = vpop.f32.mrb[0].mxu0
        %v626 = vpop.f32.mrb[0].mxu0
        %v627 = vadd.f32 0.0, %v626
        %v628 = vpop.f32.mrb[0].mxu0
        %629 = vmatprep.mubr.bf16.mxu0 0
        %630 = vmatmul.mubr.bf16.gmra.mrb[0].mxu0 %v495
        %v631 = vpop.f32.mrb[0].mxu0
        %v632 = vadd.f32 0.0, %v631
        %v633 = vpop.f32.mrb[0].mxu0
        %v634 = vpop.f32.mrb[0].mxu0
        %v635 = vadd.f32 0.0, %v634
        %v636 = vpop.f32.mrb[0].mxu0
        %637 = vmatprep.mubr.bf16.mxu0 0
        %638 = vmatmul.mubr.bf16.gmra.mrb[0].mxu0 %v498
        %v639 = vpop.f32.mrb[0].mxu0
        %v640 = vadd.f32 0.0, %v639
        %v641 = vpop.f32.mrb[0].mxu0
        %v642 = vpop.f32.mrb[0].mxu0
        %v643 = vadd.f32 0.0, %v642
        %v644 = vpop.f32.mrb[0].mxu0
        %645 = vmatprep.mubr.bf16.mxu0 0
        %646 = vmatmul.mubr.bf16.gmra.mrb[0].mxu0 %v501
        %v647 = vpop.f32.mrb[0].mxu0
        %v648 = vadd.f32 0.0, %v647
        %v649 = vpop.f32.mrb[0].mxu0
        %v650 = vpop.f32.mrb[0].mxu0
        %v651 = vadd.f32 0.0, %v650
        %v652 = vpop.f32.mrb[0].mxu0
        %653 = vmatprep.mubr.bf16.mxu0 0
        %654 = vmatmul.mubr.bf16.gmra.mrb[0].mxu0 %v504
        %v655 = vpop.f32.mrb[0].mxu0
        %v656 = vadd.f32 0.0, %v655
        %v657 = vpop.f32.mrb[0].mxu0
        %v658 = vpop.f32.mrb[0].mxu0
        %v659 = vadd.f32 0.0, %v658
        %v660 = vpop.f32.mrb[0].mxu0
        %661 = vmatprep.mubr.bf16.mxu0 0
        %662 = vmatmul.mubr.bf16.gmra.mrb[0].mxu0 %v507
        %v663 = vpop.f32.mrb[0].mxu0
        %v664 = vadd.f32 0.0, %v663
        %v665 = vpop.f32.mrb[0].mxu0
        %v666 = vpop.f32.mrb[0].mxu0
        %v667 = vadd.f32 0.0, %v666
        %v668 = vpop.f32.mrb[0].mxu0
        %669 = vdwg.mxu0
        %v672 = vcombine.high %v327, %v327
        %v674 = vunpack.c.l.s4 1966171168
        %v675 = vunpack.c.0.s8 %v674
        %v676 = vlaneseq
        %v677 = vshrl.u32 %v676, 7
        %v678 = vsub.s32 %v675, %v677
        %v679 = vrot.slane %v327, %v678
        %v681 = vunpack.c.l.s4 1966171168
        %v682 = vunpack.c.0.s8 %v681
        %v683 = vlaneseq
        %v684 = vshrl.u32 %v683, 7
        %v685 = vsub.s32 %v682, %v684
        %v686 = vrot.slane %v672, %v685
        %v687 = vcombine.high %v679, %v679
        %v688 = vcombine.high %v686, %v686
        %v690 = vunpack.c.l.s4 1966171168
        %v691 = vunpack.c.0.s8 %v690
        %v692 = vlaneseq
        %v693 = vshrl.u32 %v692, 7
        %v694 = vsub.s32 %v691, %v693
        %v695 = vrot.slane %v679, %v694
        %v697 = vunpack.c.l.s4 1966171168
        %v698 = vunpack.c.0.s8 %v697
        %v699 = vlaneseq
        %v700 = vshrl.u32 %v699, 7
        %v701 = vsub.s32 %v698, %v700
        %v702 = vrot.slane %v686, %v701
        %v704 = vunpack.c.l.s4 1966171168
        %v705 = vunpack.c.0.s8 %v704
        %v706 = vlaneseq
        %v707 = vshrl.u32 %v706, 7
        %v708 = vsub.s32 %v705, %v707
        %v709 = vrot.slane %v687, %v708
        %v711 = vunpack.c.l.s4 1966171168
        %v712 = vunpack.c.0.s8 %v711
        %v713 = vlaneseq
        %v714 = vshrl.u32 %v713, 7
        %v715 = vsub.s32 %v712, %v714
        %v716 = vrot.slane %v688, %v715
        %v717 = vcombine.high %v695, %v695
        %v718 = vcombine.high %v702, %v702
        %v719 = vcombine.high %v709, %v709
        %v720 = vcombine.high %v716, %v716
        %v721 = vcombine.high %v328, %v328
        %v723 = vunpack.c.l.s4 1966171168
        %v724 = vunpack.c.0.s8 %v723
        %v725 = vlaneseq
        %v726 = vshrl.u32 %v725, 7
        %v727 = vsub.s32 %v724, %v726
        %v728 = vrot.slane %v328, %v727
        %v730 = vunpack.c.l.s4 1966171168
        %v731 = vunpack.c.0.s8 %v730
        %v732 = vlaneseq
        %v733 = vshrl.u32 %v732, 7
        %v734 = vsub.s32 %v731, %v733
        %v735 = vrot.slane %v721, %v734
        %v736 = vcombine.high %v728, %v728
        %v737 = vcombine.high %v735, %v735
        %v739 = vunpack.c.l.s4 1966171168
        %v740 = vunpack.c.0.s8 %v739
        %v741 = vlaneseq
        %v742 = vshrl.u32 %v741, 7
        %v743 = vsub.s32 %v740, %v742
        %v744 = vrot.slane %v728, %v743
        %v746 = vunpack.c.l.s4 1966171168
        %v747 = vunpack.c.0.s8 %v746
        %v748 = vlaneseq
        %v749 = vshrl.u32 %v748, 7
        %v750 = vsub.s32 %v747, %v749
        %v751 = vrot.slane %v735, %v750
        %v753 = vunpack.c.l.s4 1966171168
        %v754 = vunpack.c.0.s8 %v753
        %v755 = vlaneseq
        %v756 = vshrl.u32 %v755, 7
        %v757 = vsub.s32 %v754, %v756
        %v758 = vrot.slane %v736, %v757
        %v760 = vunpack.c.l.s4 1966171168
        %v761 = vunpack.c.0.s8 %v760
        %v762 = vlaneseq
        %v763 = vshrl.u32 %v762, 7
        %v764 = vsub.s32 %v761, %v763
        %v765 = vrot.slane %v737, %v764
        %v766 = vcombine.high %v744, %v744
        %v767 = vcombine.high %v751, %v751
        %v768 = vcombine.high %v758, %v758
        %v769 = vcombine.high %v765, %v765
        %v770 = vlaneseq
        %v771 = vshrl.u32 %v770, 7
        %v772 = vsub.s32 0, %v771
        %v773 = vrot.slane %v695, %v772
        %v774 = vlaneseq
        %v775 = vshrl.u32 %v774, 7
        %v776 = vsub.s32 0, %v775
        %v777 = vrot.slane %v709, %v776
        %v778 = vlaneseq
        %v779 = vshrl.u32 %v778, 7
        %v780 = vsub.s32 0, %v779
        %v781 = vrot.slane %v717, %v780
        %v782 = vlaneseq
        %v783 = vshrl.u32 %v782, 7
        %v784 = vsub.s32 0, %v783
        %v785 = vrot.slane %v719, %v784
        %v786 = vlaneseq
        %v787 = vshrl.u32 %v786, 7
        %v788 = vsub.s32 0, %v787
        %v789 = vrot.slane %v702, %v788
        %v790 = vlaneseq
        %v791 = vshrl.u32 %v790, 7
        %v792 = vsub.s32 0, %v791
        %v793 = vrot.slane %v716, %v792
        %v794 = vlaneseq
        %v795 = vshrl.u32 %v794, 7
        %v796 = vsub.s32 0, %v795
        %v797 = vrot.slane %v718, %v796
        %v798 = vlaneseq
        %v799 = vshrl.u32 %v798, 7
        %v800 = vsub.s32 0, %v799
        %v801 = vrot.slane %v720, %v800
        %v802 = vlaneseq
        %v803 = vshrl.u32 %v802, 7
        %v804 = vsub.s32 0, %v803
        %v805 = vrot.slane %v744, %v804
        %v806 = vlaneseq
        %v807 = vshrl.u32 %v806, 7
        %v808 = vsub.s32 0, %v807
        %v809 = vrot.slane %v758, %v808
        %v810 = vlaneseq
        %v811 = vshrl.u32 %v810, 7
        %v812 = vsub.s32 0, %v811
        %v813 = vrot.slane %v766, %v812
        %v814 = vlaneseq
        %v815 = vshrl.u32 %v814, 7
        %v816 = vsub.s32 0, %v815
        %v817 = vrot.slane %v768, %v816
        %v818 = vlaneseq
        %v819 = vshrl.u32 %v818, 7
        %v820 = vsub.s32 0, %v819
        %v821 = vrot.slane %v751, %v820
        %v822 = vlaneseq
        %v823 = vshrl.u32 %v822, 7
        %v824 = vsub.s32 0, %v823
        %v825 = vrot.slane %v765, %v824
        %v826 = vlaneseq
        %v827 = vshrl.u32 %v826, 7
        %v828 = vsub.s32 0, %v827
        %v829 = vrot.slane %v767, %v828
        %v830 = vlaneseq
        %v831 = vshrl.u32 %v830, 7
        %v832 = vsub.s32 0, %v831
        %v833 = vrot.slane %v769, %v832
        %v850 = vadd.f32 %v544, %v773
        %v851 = vadd.f32 %v547, %v773
        %v852 = vadd.f32 %v552, %v777
        %v853 = vadd.f32 %v555, %v777
        %v854 = vadd.f32 %v560, %v781
        %v855 = vadd.f32 %v563, %v781
        %v856 = vadd.f32 %v568, %v785
        %v857 = vadd.f32 %v571, %v785
        %v858 = vadd.f32 %v576, %v789
        %v859 = vadd.f32 %v579, %v789
        %v860 = vadd.f32 %v584, %v793
        %v861 = vadd.f32 %v587, %v793
        %v862 = vadd.f32 %v592, %v797
        %v863 = vadd.f32 %v595, %v797
        %v864 = vadd.f32 %v600, %v801
        %v865 = vadd.f32 %v603, %v801
        %v866 = vadd.f32 %v608, %v805
        %v867 = vadd.f32 %v611, %v805
        %v868 = vadd.f32 %v616, %v809
        %v869 = vadd.f32 %v619, %v809
        %v870 = vadd.f32 %v624, %v813
        %v871 = vadd.f32 %v627, %v813
        %v872 = vadd.f32 %v632, %v817
        %v873 = vadd.f32 %v635, %v817
        %v874 = vadd.f32 %v640, %v821
        %v875 = vadd.f32 %v643, %v821
        %v876 = vadd.f32 %v648, %v825
        %v877 = vadd.f32 %v651, %v825
        %v878 = vadd.f32 %v656, %v829
        %v879 = vadd.f32 %v659, %v829
        %v880 = vadd.f32 %v664, %v833
        %v881 = vadd.f32 %v667, %v833
        %v882 = vmax.f32 %v850, 0.0
        %v883 = vmax.f32 %v851, 0.0
        %v884 = vmax.f32 %v852, 0.0
        %v885 = vmax.f32 %v853, 0.0
        %v886 = vmax.f32 %v854, 0.0
        %v887 = vmax.f32 %v855, 0.0
        %v888 = vmax.f32 %v856, 0.0
        %v889 = vmax.f32 %v857, 0.0
        %v890 = vmax.f32 %v858, 0.0
        %v891 = vmax.f32 %v859, 0.0
        %v892 = vmax.f32 %v860, 0.0
        %v893 = vmax.f32 %v861, 0.0
        %v894 = vmax.f32 %v862, 0.0
        %v895 = vmax.f32 %v863, 0.0
        %v896 = vmax.f32 %v864, 0.0
        %v897 = vmax.f32 %v865, 0.0
        %v898 = vmax.f32 %v866, 0.0
        %v899 = vmax.f32 %v867, 0.0
        %v900 = vmax.f32 %v868, 0.0
        %v901 = vmax.f32 %v869, 0.0
        %v902 = vmax.f32 %v870, 0.0
        %v903 = vmax.f32 %v871, 0.0
        %v904 = vmax.f32 %v872, 0.0
        %v905 = vmax.f32 %v873, 0.0
        %v906 = vmax.f32 %v874, 0.0
        %v907 = vmax.f32 %v875, 0.0
        %v908 = vmax.f32 %v876, 0.0
        %v909 = vmax.f32 %v877, 0.0
        %v910 = vmax.f32 %v878, 0.0
        %v911 = vmax.f32 %v879, 0.0
        %v912 = vmax.f32 %v880, 0.0
        %v913 = vmax.f32 %v881, 0.0
        %v915 = vlaneseq
        %v916 = vshrl.u32 %v915, 7
        %v917 = vsub.s32 0, %v916
        %v918 = vrot.slane %v333, %v917
        %v920 = vmul.f32 %v882, %v918
        %v921 = vmul.f32 %v883, %v918
        %v922 = vmul.f32 %v884, %v918
        %v923 = vmul.f32 %v885, %v918
        %v924 = vmul.f32 %v886, %v918
        %v925 = vmul.f32 %v887, %v918
        %v926 = vmul.f32 %v888, %v918
        %v927 = vmul.f32 %v889, %v918
        %v928 = vmul.f32 %v890, %v918
        %v929 = vmul.f32 %v891, %v918
        %v930 = vmul.f32 %v892, %v918
        %v931 = vmul.f32 %v893, %v918
        %v932 = vmul.f32 %v894, %v918
        %v933 = vmul.f32 %v895, %v918
        %v934 = vmul.f32 %v896, %v918
        %v935 = vmul.f32 %v897, %v918
        %v936 = vmul.f32 %v898, %v918
        %v937 = vmul.f32 %v899, %v918
        %v938 = vmul.f32 %v900, %v918
        %v939 = vmul.f32 %v901, %v918
        %v940 = vmul.f32 %v902, %v918
        %v941 = vmul.f32 %v903, %v918
        %v942 = vmul.f32 %v904, %v918
        %v943 = vmul.f32 %v905, %v918
        %v944 = vmul.f32 %v906, %v918
        %v945 = vmul.f32 %v907, %v918
        %v946 = vmul.f32 %v908, %v918
        %v947 = vmul.f32 %v909, %v918
        %v948 = vmul.f32 %v910, %v918
        %v949 = vmul.f32 %v911, %v918
        %v950 = vmul.f32 %v912, %v918
        %v951 = vmul.f32 %v913, %v918
        %v952 = vsel %vm460, %v920, 0.0
        %953 = vadd.xlane.f32.xlu0 %v952
        %v954 = vpop.xlane.xlu0 %953
        %v955 = vsel %vm460, %v921, 0.0
        %956 = vadd.xlane.f32.xlu0 %v955
        %v957 = vpop.xlane.xlu0 %956
        %v958 = vsel %vm460, %v922, 0.0
        %959 = vadd.xlane.f32.xlu0 %v958
        %v960 = vpop.xlane.xlu0 %959
        %v961 = vsel %vm460, %v923, 0.0
        %962 = vadd.xlane.f32.xlu0 %v961
        %v963 = vpop.xlane.xlu0 %962
        %v964 = vsel %vm460, %v924, 0.0
        %965 = vadd.xlane.f32.xlu0 %v964
        %v966 = vpop.xlane.xlu0 %965
        %v967 = vsel %vm460, %v925, 0.0
        %968 = vadd.xlane.f32.xlu0 %v967
        %v969 = vpop.xlane.xlu0 %968
        %v970 = vsel %vm460, %v926, 0.0
        %971 = vadd.xlane.f32.xlu0 %v970
        %v972 = vpop.xlane.xlu0 %971
        %v973 = vsel %vm460, %v927, 0.0
        %974 = vadd.xlane.f32.xlu0 %v973
        %v975 = vpop.xlane.xlu0 %974
        %v976 = vsel %vm460, %v928, 0.0
        %977 = vadd.xlane.f32.xlu0 %v976
        %v978 = vpop.xlane.xlu0 %977
        %v979 = vsel %vm460, %v929, 0.0
        %980 = vadd.xlane.f32.xlu0 %v979
        %v981 = vpop.xlane.xlu0 %980
        %v982 = vsel %vm460, %v930, 0.0
        %983 = vadd.xlane.f32.xlu0 %v982
        %v984 = vpop.xlane.xlu0 %983
        %v985 = vsel %vm460, %v931, 0.0
        %986 = vadd.xlane.f32.xlu0 %v985
        %v987 = vpop.xlane.xlu0 %986
        %v988 = vsel %vm460, %v932, 0.0
        %989 = vadd.xlane.f32.xlu0 %v988
        %v990 = vpop.xlane.xlu0 %989
        %v991 = vsel %vm460, %v933, 0.0
        %992 = vadd.xlane.f32.xlu0 %v991
        %v993 = vpop.xlane.xlu0 %992
        %v994 = vsel %vm460, %v934, 0.0
        %995 = vadd.xlane.f32.xlu0 %v994
        %v996 = vpop.xlane.xlu0 %995
        %v997 = vsel %vm460, %v935, 0.0
        %998 = vadd.xlane.f32.xlu0 %v997
        %v999 = vpop.xlane.xlu0 %998
        %v1000 = vsel %vm460, %v936, 0.0
        %1001 = vadd.xlane.f32.xlu0 %v1000
        %v1002 = vpop.xlane.xlu0 %1001
        %v1003 = vsel %vm460, %v937, 0.0
        %1004 = vadd.xlane.f32.xlu0 %v1003
        %v1005 = vpop.xlane.xlu0 %1004
        %v1006 = vsel %vm460, %v938, 0.0
        %1007 = vadd.xlane.f32.xlu0 %v1006
        %v1008 = vpop.xlane.xlu0 %1007
        %v1009 = vsel %vm460, %v939, 0.0
        %1010 = vadd.xlane.f32.xlu0 %v1009
        %v1011 = vpop.xlane.xlu0 %1010
        %v1012 = vsel %vm460, %v940, 0.0
        %1013 = vadd.xlane.f32.xlu0 %v1012
        %v1014 = vpop.xlane.xlu0 %1013
        %v1015 = vsel %vm460, %v941, 0.0
        %1016 = vadd.xlane.f32.xlu0 %v1015
        %v1017 = vpop.xlane.xlu0 %1016
        %v1018 = vsel %vm460, %v942, 0.0
        %1019 = vadd.xlane.f32.xlu0 %v1018
        %v1020 = vpop.xlane.xlu0 %1019
        %v1021 = vsel %vm460, %v943, 0.0
        %1022 = vadd.xlane.f32.xlu0 %v1021
        %v1023 = vpop.xlane.xlu0 %1022
        %v1024 = vsel %vm460, %v944, 0.0
        %1025 = vadd.xlane.f32.xlu0 %v1024
        %v1026 = vpop.xlane.xlu0 %1025
        %v1027 = vsel %vm460, %v945, 0.0
        %1028 = vadd.xlane.f32.xlu0 %v1027
        %v1029 = vpop.xlane.xlu0 %1028
        %v1030 = vsel %vm460, %v946, 0.0
        %1031 = vadd.xlane.f32.xlu0 %v1030
        %v1032 = vpop.xlane.xlu0 %1031
        %v1033 = vsel %vm460, %v947, 0.0
        %1034 = vadd.xlane.f32.xlu0 %v1033
        %v1035 = vpop.xlane.xlu0 %1034
        %v1036 = vsel %vm460, %v948, 0.0
        %1037 = vadd.xlane.f32.xlu0 %v1036
        %v1038 = vpop.xlane.xlu0 %1037
        %v1039 = vsel %vm460, %v949, 0.0
        %1040 = vadd.xlane.f32.xlu0 %v1039
        %v1041 = vpop.xlane.xlu0 %1040
        %v1042 = vsel %vm460, %v950, 0.0
        %1043 = vadd.xlane.f32.xlu0 %v1042
        %v1044 = vpop.xlane.xlu0 %1043
        %v1045 = vsel %vm460, %v951, 0.0
        %1046 = vadd.xlane.f32.xlu0 %v1045
        %v1047 = vpop.xlane.xlu0 %1046
        %v1080 = vlaneseq
        %v1081 = vand.u32 %v1080, 127
        %v1082 = vlaneseq
        %v1083 = vshrl.u32 %v1082, 7
        %v1084 = vsub.s32 %v1081, %v1083
        %v1085 = vrot.slane %v954, %v1084
        %v1086 = vadd.s32 %v1081, 4294967288
        %v1087 = vlaneseq
        %v1088 = vshrl.u32 %v1087, 7
        %v1089 = vsub.s32 %v1086, %v1088
        %v1090 = vrot.slane %v957, %v1089
        %vm1091 = vcmask 130112
        %v1092 = vsel %vm1091, %v1090, %v1085
        %v1093 = vlaneseq
        %v1094 = vshrl.u32 %v1093, 7
        %v1095 = vsub.s32 %v1081, %v1094
        %v1096 = vrot.slane %v960, %v1095
        %v1097 = vlaneseq
        %v1098 = vshrl.u32 %v1097, 7
        %v1099 = vsub.s32 %v1086, %v1098
        %v1100 = vrot.slane %v963, %v1099
        %v1101 = vsel %vm1091, %v1100, %v1096
        %v1102 = vlaneseq
        %v1103 = vshrl.u32 %v1102, 7
        %v1104 = vsub.s32 %v1081, %v1103
        %v1105 = vrot.slane %v966, %v1104
        %v1106 = vlaneseq
        %v1107 = vshrl.u32 %v1106, 7
        %v1108 = vsub.s32 %v1086, %v1107
        %v1109 = vrot.slane %v969, %v1108
        %v1110 = vsel %vm1091, %v1109, %v1105
        %v1111 = vlaneseq
        %v1112 = vshrl.u32 %v1111, 7
        %v1113 = vsub.s32 %v1081, %v1112
        %v1114 = vrot.slane %v972, %v1113
        %v1115 = vlaneseq
        %v1116 = vshrl.u32 %v1115, 7
        %v1117 = vsub.s32 %v1086, %v1116
        %v1118 = vrot.slane %v975, %v1117
        %v1119 = vsel %vm1091, %v1118, %v1114
        %v1120 = vlaneseq
        %v1121 = vshrl.u32 %v1120, 7
        %v1122 = vsub.s32 %v1081, %v1121
        %v1123 = vrot.slane %v978, %v1122
        %v1124 = vlaneseq
        %v1125 = vshrl.u32 %v1124, 7
        %v1126 = vsub.s32 %v1086, %v1125
        %v1127 = vrot.slane %v981, %v1126
        %v1128 = vsel %vm1091, %v1127, %v1123
        %v1129 = vlaneseq
        %v1130 = vshrl.u32 %v1129, 7
        %v1131 = vsub.s32 %v1081, %v1130
        %v1132 = vrot.slane %v984, %v1131
        %v1133 = vlaneseq
        %v1134 = vshrl.u32 %v1133, 7
        %v1135 = vsub.s32 %v1086, %v1134
        %v1136 = vrot.slane %v987, %v1135
        %v1137 = vsel %vm1091, %v1136, %v1132
        %v1138 = vlaneseq
        %v1139 = vshrl.u32 %v1138, 7
        %v1140 = vsub.s32 %v1081, %v1139
        %v1141 = vrot.slane %v990, %v1140
        %v1142 = vlaneseq
        %v1143 = vshrl.u32 %v1142, 7
        %v1144 = vsub.s32 %v1086, %v1143
        %v1145 = vrot.slane %v993, %v1144
        %v1146 = vsel %vm1091, %v1145, %v1141
        %v1147 = vlaneseq
        %v1148 = vshrl.u32 %v1147, 7
        %v1149 = vsub.s32 %v1081, %v1148
        %v1150 = vrot.slane %v996, %v1149
        %v1151 = vlaneseq
        %v1152 = vshrl.u32 %v1151, 7
        %v1153 = vsub.s32 %v1086, %v1152
        %v1154 = vrot.slane %v999, %v1153
        %v1155 = vsel %vm1091, %v1154, %v1150
        %v1156 = vlaneseq
        %v1157 = vshrl.u32 %v1156, 7
        %v1158 = vsub.s32 %v1081, %v1157
        %v1159 = vrot.slane %v1002, %v1158
        %v1160 = vlaneseq
        %v1161 = vshrl.u32 %v1160, 7
        %v1162 = vsub.s32 %v1086, %v1161
        %v1163 = vrot.slane %v1005, %v1162
        %v1164 = vsel %vm1091, %v1163, %v1159
        %v1165 = vlaneseq
        %v1166 = vshrl.u32 %v1165, 7
        %v1167 = vsub.s32 %v1081, %v1166
        %v1168 = vrot.slane %v1008, %v1167
        %v1169 = vlaneseq
        %v1170 = vshrl.u32 %v1169, 7
        %v1171 = vsub.s32 %v1086, %v1170
        %v1172 = vrot.slane %v1011, %v1171
        %v1173 = vsel %vm1091, %v1172, %v1168
        %v1174 = vlaneseq
        %v1175 = vshrl.u32 %v1174, 7
        %v1176 = vsub.s32 %v1081, %v1175
        %v1177 = vrot.slane %v1014, %v1176
        %v1178 = vlaneseq
        %v1179 = vshrl.u32 %v1178, 7
        %v1180 = vsub.s32 %v1086, %v1179
        %v1181 = vrot.slane %v1017, %v1180
        %v1182 = vsel %vm1091, %v1181, %v1177
        %v1183 = vlaneseq
        %v1184 = vshrl.u32 %v1183, 7
        %v1185 = vsub.s32 %v1081, %v1184
        %v1186 = vrot.slane %v1020, %v1185
        %v1187 = vlaneseq
        %v1188 = vshrl.u32 %v1187, 7
        %v1189 = vsub.s32 %v1086, %v1188
        %v1190 = vrot.slane %v1023, %v1189
        %v1191 = vsel %vm1091, %v1190, %v1186
        %v1192 = vlaneseq
        %v1193 = vshrl.u32 %v1192, 7
        %v1194 = vsub.s32 %v1081, %v1193
        %v1195 = vrot.slane %v1026, %v1194
        %v1196 = vlaneseq
        %v1197 = vshrl.u32 %v1196, 7
        %v1198 = vsub.s32 %v1086, %v1197
        %v1199 = vrot.slane %v1029, %v1198
        %v1200 = vsel %vm1091, %v1199, %v1195
        %v1201 = vlaneseq
        %v1202 = vshrl.u32 %v1201, 7
        %v1203 = vsub.s32 %v1081, %v1202
        %v1204 = vrot.slane %v1032, %v1203
        %v1205 = vlaneseq
        %v1206 = vshrl.u32 %v1205, 7
        %v1207 = vsub.s32 %v1086, %v1206
        %v1208 = vrot.slane %v1035, %v1207
        %v1209 = vsel %vm1091, %v1208, %v1204
        %v1210 = vlaneseq
        %v1211 = vshrl.u32 %v1210, 7
        %v1212 = vsub.s32 %v1081, %v1211
        %v1213 = vrot.slane %v1038, %v1212
        %v1214 = vlaneseq
        %v1215 = vshrl.u32 %v1214, 7
        %v1216 = vsub.s32 %v1086, %v1215
        %v1217 = vrot.slane %v1041, %v1216
        %v1218 = vsel %vm1091, %v1217, %v1213
        %v1219 = vlaneseq
        %v1220 = vshrl.u32 %v1219, 7
        %v1221 = vsub.s32 %v1081, %v1220
        %v1222 = vrot.slane %v1044, %v1221
        %v1223 = vlaneseq
        %v1224 = vshrl.u32 %v1223, 7
        %v1225 = vsub.s32 %v1086, %v1224
        %v1226 = vrot.slane %v1047, %v1225
        %v1227 = vsel %vm1091, %v1226, %v1222
        %vm1228 = vcmask 1041409
        %v1229 = vsel %vm1228, %v1101, %v1092
        %vm1230 = vcmask 1042434
        %v1231 = vsel %vm1230, %v1110, %v1229
        %vm1232 = vcmask 1043459
        %v1233 = vsel %vm1232, %v1119, %v1231
        %vm1234 = vcmask 1044484
        %v1235 = vsel %vm1234, %v1128, %v1233
        %vm1236 = vcmask 1045509
        %v1237 = vsel %vm1236, %v1137, %v1235
        %vm1238 = vcmask 1046534
        %v1239 = vsel %vm1238, %v1146, %v1237
        %vm1240 = vcmask 1047559
        %v1241 = vsel %vm1240, %v1155, %v1239
        %v1242 = vsel %vm1228, %v1173, %v1164
        %v1243 = vsel %vm1230, %v1182, %v1242
        %v1244 = vsel %vm1232, %v1191, %v1243
        %v1245 = vsel %vm1234, %v1200, %v1244
        %v1246 = vsel %vm1236, %v1209, %v1245
        %v1247 = vsel %vm1238, %v1218, %v1246
        %v1248 = vsel %vm1240, %v1227, %v1247
        %vm1251 = vcmask 130048
        %1252 = vst.msk [vmem:[#allocation2] sm:$0xff] %vm1251, %v1241
        %1253 = vst.msk [vmem:[#allocation2 + $0x8] sm:$0xff] %vm1251, %v1248
        %v1254 = vld [vmem:[#allocation2] sm:$0xff]
        %v1255 = vld [vmem:[#allocation2 + $0x8] sm:$0xff]
        %1256 = vmax.xlane.f32.xlu0 %v1254
        %v1257 = vpop.xlane.xlu0 %1256
        %1258 = vmax.xlane.f32.xlu0 %v1255
        %v1259 = vpop.xlane.xlu0 %1258
        %v1260 = vsub.f32 %v1254, %v1257
        %v1261 = vsub.f32 %v1255, %v1259
        %v1262 = vmul.f32 %v1260, 1.442695
        %v1263 = vpow.pop %v1262
        %v1264 = vmul.f32 %v1261, 1.442695
        %v1265 = vpow.pop %v1264
        %1266 = vadd.xlane.f32.xlu0 %v1263
        %v1267 = vpop.xlane.xlu0 %1266
        %1268 = vadd.xlane.f32.xlu0 %v1265
        %v1269 = vpop.xlane.xlu0 %1268
        %v1270 = vrcp.pop %v1267
        %v1271 = vrcp.pop %v1269
        %v1272 = vmul.f32 %v1263, %v1270
        %v1273 = vmul.f32 %v1265, %v1271
        %1274 = vst [vmem:[%s321] sm:$0xff] %v1272
        %1275 = vst [vmem:[%s321 + $0x8] sm:$0xff] %v1273
        %v1276 = vld [vmem:[%s268] sm:$0xf]
        %v1277 = vld [vmem:[%s268 + $0x4] sm:$0xf]
        %v1278 = vld [vmem:[%s268 + $0x8] sm:$0xf]
        %v1279 = vld [vmem:[%s268 + $0xc] sm:$0xf]
        %v1280 = vld [vmem:[%s268 + $0x10] sm:$0xf]
        %v1281 = vld [vmem:[%s268 + $0x14] sm:$0xf]
        %v1282 = vld [vmem:[%s268 + $0x18] sm:$0xf]
        %v1283 = vld [vmem:[%s268 + $0x1c] sm:$0xf]
        %v1284 = vld [vmem:[%s268 + $0x20] sm:$0xf]
        %v1285 = vld [vmem:[%s268 + $0x24] sm:$0xf]
        %v1286 = vld [vmem:[%s268 + $0x28] sm:$0xf]
        %v1287 = vld [vmem:[%s268 + $0x2c] sm:$0xf]
        %v1288 = vld [vmem:[%s268 + $0x30] sm:$0xf]
        %v1289 = vld [vmem:[%s268 + $0x34] sm:$0xf]
        %v1290 = vld [vmem:[%s268 + $0x38] sm:$0xf]
        %v1291 = vld [vmem:[%s268 + $0x3c] sm:$0xf]
        %v1292 = vld [vmem:[%s268 + $0x40] sm:$0xf]
        %v1293 = vld [vmem:[%s268 + $0x44] sm:$0xf]
        %v1294 = vld [vmem:[%s268 + $0x48] sm:$0xf]
        %v1295 = vld [vmem:[%s268 + $0x4c] sm:$0xf]
        %v1296 = vld [vmem:[%s268 + $0x50] sm:$0xf]
        %v1297 = vld [vmem:[%s268 + $0x54] sm:$0xf]
        %v1298 = vld [vmem:[%s268 + $0x58] sm:$0xf]
        %v1299 = vld [vmem:[%s268 + $0x5c] sm:$0xf]
        %v1300 = vld [vmem:[%s268 + $0x60] sm:$0xf]
        %v1301 = vld [vmem:[%s268 + $0x64] sm:$0xf]
        %v1302 = vld [vmem:[%s268 + $0x68] sm:$0xf]
        %v1303 = vld [vmem:[%s268 + $0x6c] sm:$0xf]
        %v1304 = vld [vmem:[%s268 + $0x70] sm:$0xf]
        %v1305 = vld [vmem:[%s268 + $0x74] sm:$0xf]
        %v1306 = vld [vmem:[%s268 + $0x78] sm:$0xf]
        %v1307 = vld [vmem:[%s268 + $0x7c] sm:$0xf]
        %v1308 = vpack.c.bf16 %v1273, %v1272
        %v1310 = vpack.i.b16 %v1308, %v1308
        %v1312 = vlaneseq
        %v1313 = vshrl.u32 %v1312, 7
        %v1314 = vsub.s32 0, %v1313
        %v1315 = vrot.slane %v1310, %v1314
        %1317 = vbcast.lane.c.b16.xlu0 %v1315, 256
        %v1318 = vpop.permute.xlu0 %1317
        %v1319 = vshrl.u32 %v1308, 16
        %v1320 = vpack.i.b16 %v1319, %v1319
        %v1322 = vlaneseq
        %v1323 = vshrl.u32 %v1322, 7
        %v1324 = vsub.s32 0, %v1323
        %v1325 = vrot.slane %v1320, %v1324
        %1327 = vbcast.lane.c.b16.xlu0 %v1325, 256
        %v1328 = vpop.permute.xlu0 %1327
        %v1329 = vlaneseq
        %v1330 = vshrl.u32 %v1329, 7
        %v1331 = vsub.s32 1, %v1330
        %v1332 = vrot.slane %v1310, %v1331
        %1334 = vbcast.lane.c.b16.xlu0 %v1332, 256
        %v1335 = vpop.permute.xlu0 %1334
        %v1336 = vlaneseq
        %v1337 = vshrl.u32 %v1336, 7
        %v1338 = vsub.s32 1, %v1337
        %v1339 = vrot.slane %v1320, %v1338
        %1341 = vbcast.lane.c.b16.xlu0 %v1339, 256
        %v1342 = vpop.permute.xlu0 %1341
        %v1343 = vlaneseq
        %v1344 = vshrl.u32 %v1343, 7
        %v1345 = vsub.s32 2, %v1344
        %v1346 = vrot.slane %v1310, %v1345
        %1348 = vbcast.lane.c.b16.xlu0 %v1346, 256
        %v1349 = vpop.permute.xlu0 %1348
        %v1350 = vlaneseq
        %v1351 = vshrl.u32 %v1350, 7
        %v1352 = vsub.s32 2, %v1351
        %v1353 = vrot.slane %v1320, %v1352
        %1355 = vbcast.lane.c.b16.xlu0 %v1353, 256
        %v1356 = vpop.permute.xlu0 %1355
        %v1357 = vlaneseq
        %v1358 = vshrl.u32 %v1357, 7
        %v1359 = vsub.s32 3, %v1358
        %v1360 = vrot.slane %v1310, %v1359
        %1362 = vbcast.lane.c.b16.xlu0 %v1360, 256
        %v1363 = vpop.permute.xlu0 %1362
        %v1364 = vlaneseq
        %v1365 = vshrl.u32 %v1364, 7
        %v1366 = vsub.s32 3, %v1365
        %v1367 = vrot.slane %v1320, %v1366
        %1369 = vbcast.lane.c.b16.xlu0 %v1367, 256
        %v1370 = vpop.permute.xlu0 %1369
        %v1371 = vlaneseq
        %v1372 = vshrl.u32 %v1371, 7
        %v1373 = vsub.s32 4, %v1372
        %v1374 = vrot.slane %v1310, %v1373
        %1376 = vbcast.lane.c.b16.xlu0 %v1374, 256
        %v1377 = vpop.permute.xlu0 %1376
        %v1378 = vlaneseq
        %v1379 = vshrl.u32 %v1378, 7
        %v1380 = vsub.s32 4, %v1379
        %v1381 = vrot.slane %v1320, %v1380
        %1383 = vbcast.lane.c.b16.xlu0 %v1381, 256
        %v1384 = vpop.permute.xlu0 %1383
        %v1385 = vlaneseq
        %v1386 = vshrl.u32 %v1385, 7
        %v1387 = vsub.s32 5, %v1386
        %v1388 = vrot.slane %v1310, %v1387
        %1390 = vbcast.lane.c.b16.xlu0 %v1388, 256
        %v1391 = vpop.permute.xlu0 %1390
        %v1392 = vlaneseq
        %v1393 = vshrl.u32 %v1392, 7
        %v1394 = vsub.s32 5, %v1393
        %v1395 = vrot.slane %v1320, %v1394
        %1397 = vbcast.lane.c.b16.xlu0 %v1395, 256
        %v1398 = vpop.permute.xlu0 %1397
        %v1399 = vlaneseq
        %v1400 = vshrl.u32 %v1399, 7
        %v1401 = vsub.s32 6, %v1400
        %v1402 = vrot.slane %v1310, %v1401
        %1404 = vbcast.lane.c.b16.xlu0 %v1402, 256
        %v1405 = vpop.permute.xlu0 %1404
        %v1406 = vlaneseq
        %v1407 = vshrl.u32 %v1406, 7
        %v1408 = vsub.s32 6, %v1407
        %v1409 = vrot.slane %v1320, %v1408
        %1411 = vbcast.lane.c.b16.xlu0 %v1409, 256
        %v1412 = vpop.permute.xlu0 %1411
        %v1413 = vlaneseq
        %v1414 = vshrl.u32 %v1413, 7
        %v1415 = vsub.s32 7, %v1414
        %v1416 = vrot.slane %v1310, %v1415
        %1418 = vbcast.lane.c.b16.xlu0 %v1416, 256
        %v1419 = vpop.permute.xlu0 %1418
        %v1420 = vlaneseq
        %v1421 = vshrl.u32 %v1420, 7
        %v1422 = vsub.s32 7, %v1421
        %v1423 = vrot.slane %v1320, %v1422
        %1425 = vbcast.lane.c.b16.xlu0 %v1423, 256
        %v1426 = vpop.permute.xlu0 %1425
        %v1444 = vunpack.c.l.s4 839922192
        %v1445 = vunpack.c.0.s8 %v1444
        %v1446 = vlaneseq
        %v1447 = vshrl.u32 %v1446, 7
        %v1448 = vsub.s32 %v1445, %v1447
        %v1449 = vrot.slane %v1318, %v1448
        %v1451 = vunpack.c.l.s4 1985246804
        %v1452 = vunpack.c.0.s8 %v1451
        %v1453 = vlaneseq
        %v1454 = vshrl.u32 %v1453, 7
        %v1455 = vsub.s32 %v1452, %v1454
        %v1456 = vrot.slane %v1318, %v1455
        %v1458 = vunpack.c.l.s4 839922192
        %v1459 = vunpack.c.0.s8 %v1458
        %v1460 = vlaneseq
        %v1461 = vshrl.u32 %v1460, 7
        %v1462 = vsub.s32 %v1459, %v1461
        %v1463 = vrot.slane %v1328, %v1462
        %v1465 = vunpack.c.l.s4 1985246804
        %v1466 = vunpack.c.0.s8 %v1465
        %v1467 = vlaneseq
        %v1468 = vshrl.u32 %v1467, 7
        %v1469 = vsub.s32 %v1466, %v1468
        %v1470 = vrot.slane %v1328, %v1469
        %v1472 = vunpack.c.l.s4 839922192
        %v1473 = vunpack.c.0.s8 %v1472
        %v1474 = vlaneseq
        %v1475 = vshrl.u32 %v1474, 7
        %v1476 = vsub.s32 %v1473, %v1475
        %v1477 = vrot.slane %v1335, %v1476
        %v1479 = vunpack.c.l.s4 1985246804
        %v1480 = vunpack.c.0.s8 %v1479
        %v1481 = vlaneseq
        %v1482 = vshrl.u32 %v1481, 7
        %v1483 = vsub.s32 %v1480, %v1482
        %v1484 = vrot.slane %v1335, %v1483
        %v1486 = vunpack.c.l.s4 839922192
        %v1487 = vunpack.c.0.s8 %v1486
        %v1488 = vlaneseq
        %v1489 = vshrl.u32 %v1488, 7
        %v1490 = vsub.s32 %v1487, %v1489
        %v1491 = vrot.slane %v1342, %v1490
        %v1493 = vunpack.c.l.s4 1985246804
        %v1494 = vunpack.c.0.s8 %v1493
        %v1495 = vlaneseq
        %v1496 = vshrl.u32 %v1495, 7
        %v1497 = vsub.s32 %v1494, %v1496
        %v1498 = vrot.slane %v1342, %v1497
        %v1500 = vunpack.c.l.s4 839922192
        %v1501 = vunpack.c.0.s8 %v1500
        %v1502 = vlaneseq
        %v1503 = vshrl.u32 %v1502, 7
        %v1504 = vsub.s32 %v1501, %v1503
        %v1505 = vrot.slane %v1349, %v1504
        %v1507 = vunpack.c.l.s4 1985246804
        %v1508 = vunpack.c.0.s8 %v1507
        %v1509 = vlaneseq
        %v1510 = vshrl.u32 %v1509, 7
        %v1511 = vsub.s32 %v1508, %v1510
        %v1512 = vrot.slane %v1349, %v1511
        %v1514 = vunpack.c.l.s4 839922192
        %v1515 = vunpack.c.0.s8 %v1514
        %v1516 = vlaneseq
        %v1517 = vshrl.u32 %v1516, 7
        %v1518 = vsub.s32 %v1515, %v1517
        %v1519 = vrot.slane %v1356, %v1518
        %v1521 = vunpack.c.l.s4 1985246804
        %v1522 = vunpack.c.0.s8 %v1521
        %v1523 = vlaneseq
        %v1524 = vshrl.u32 %v1523, 7
        %v1525 = vsub.s32 %v1522, %v1524
        %v1526 = vrot.slane %v1356, %v1525
        %v1528 = vunpack.c.l.s4 839922192
        %v1529 = vunpack.c.0.s8 %v1528
        %v1530 = vlaneseq
        %v1531 = vshrl.u32 %v1530, 7
        %v1532 = vsub.s32 %v1529, %v1531
        %v1533 = vrot.slane %v1363, %v1532
        %v1535 = vunpack.c.l.s4 1985246804
        %v1536 = vunpack.c.0.s8 %v1535
        %v1537 = vlaneseq
        %v1538 = vshrl.u32 %v1537, 7
        %v1539 = vsub.s32 %v1536, %v1538
        %v1540 = vrot.slane %v1363, %v1539
        %v1542 = vunpack.c.l.s4 839922192
        %v1543 = vunpack.c.0.s8 %v1542
        %v1544 = vlaneseq
        %v1545 = vshrl.u32 %v1544, 7
        %v1546 = vsub.s32 %v1543, %v1545
        %v1547 = vrot.slane %v1370, %v1546
        %v1549 = vunpack.c.l.s4 1985246804
        %v1550 = vunpack.c.0.s8 %v1549
        %v1551 = vlaneseq
        %v1552 = vshrl.u32 %v1551, 7
        %v1553 = vsub.s32 %v1550, %v1552
        %v1554 = vrot.slane %v1370, %v1553
        %v1556 = vunpack.c.l.s4 839922192
        %v1557 = vunpack.c.0.s8 %v1556
        %v1558 = vlaneseq
        %v1559 = vshrl.u32 %v1558, 7
        %v1560 = vsub.s32 %v1557, %v1559
        %v1561 = vrot.slane %v1377, %v1560
        %v1563 = vunpack.c.l.s4 1985246804
        %v1564 = vunpack.c.0.s8 %v1563
        %v1565 = vlaneseq
        %v1566 = vshrl.u32 %v1565, 7
        %v1567 = vsub.s32 %v1564, %v1566
        %v1568 = vrot.slane %v1377, %v1567
        %v1570 = vunpack.c.l.s4 839922192
        %v1571 = vunpack.c.0.s8 %v1570
        %v1572 = vlaneseq
        %v1573 = vshrl.u32 %v1572, 7
        %v1574 = vsub.s32 %v1571, %v1573
        %v1575 = vrot.slane %v1384, %v1574
        %v1577 = vunpack.c.l.s4 1985246804
        %v1578 = vunpack.c.0.s8 %v1577
        %v1579 = vlaneseq
        %v1580 = vshrl.u32 %v1579, 7
        %v1581 = vsub.s32 %v1578, %v1580
        %v1582 = vrot.slane %v1384, %v1581
        %v1584 = vunpack.c.l.s4 839922192
        %v1585 = vunpack.c.0.s8 %v1584
        %v1586 = vlaneseq
        %v1587 = vshrl.u32 %v1586, 7
        %v1588 = vsub.s32 %v1585, %v1587
        %v1589 = vrot.slane %v1391, %v1588
        %v1591 = vunpack.c.l.s4 1985246804
        %v1592 = vunpack.c.0.s8 %v1591
        %v1593 = vlaneseq
        %v1594 = vshrl.u32 %v1593, 7
        %v1595 = vsub.s32 %v1592, %v1594
        %v1596 = vrot.slane %v1391, %v1595
        %v1598 = vunpack.c.l.s4 839922192
        %v1599 = vunpack.c.0.s8 %v1598
        %v1600 = vlaneseq
        %v1601 = vshrl.u32 %v1600, 7
        %v1602 = vsub.s32 %v1599, %v1601
        %v1603 = vrot.slane %v1398, %v1602
        %v1605 = vunpack.c.l.s4 1985246804
        %v1606 = vunpack.c.0.s8 %v1605
        %v1607 = vlaneseq
        %v1608 = vshrl.u32 %v1607, 7
        %v1609 = vsub.s32 %v1606, %v1608
        %v1610 = vrot.slane %v1398, %v1609
        %v1612 = vunpack.c.l.s4 839922192
        %v1613 = vunpack.c.0.s8 %v1612
        %v1614 = vlaneseq
        %v1615 = vshrl.u32 %v1614, 7
        %v1616 = vsub.s32 %v1613, %v1615
        %v1617 = vrot.slane %v1405, %v1616
        %v1619 = vunpack.c.l.s4 1985246804
        %v1620 = vunpack.c.0.s8 %v1619
        %v1621 = vlaneseq
        %v1622 = vshrl.u32 %v1621, 7
        %v1623 = vsub.s32 %v1620, %v1622
        %v1624 = vrot.slane %v1405, %v1623
        %v1626 = vunpack.c.l.s4 839922192
        %v1627 = vunpack.c.0.s8 %v1626
        %v1628 = vlaneseq
        %v1629 = vshrl.u32 %v1628, 7
        %v1630 = vsub.s32 %v1627, %v1629
        %v1631 = vrot.slane %v1412, %v1630
        %v1633 = vunpack.c.l.s4 1985246804
        %v1634 = vunpack.c.0.s8 %v1633
        %v1635 = vlaneseq
        %v1636 = vshrl.u32 %v1635, 7
        %v1637 = vsub.s32 %v1634, %v1636
        %v1638 = vrot.slane %v1412, %v1637
        %v1640 = vunpack.c.l.s4 839922192
        %v1641 = vunpack.c.0.s8 %v1640
        %v1642 = vlaneseq
        %v1643 = vshrl.u32 %v1642, 7
        %v1644 = vsub.s32 %v1641, %v1643
        %v1645 = vrot.slane %v1419, %v1644
        %v1647 = vunpack.c.l.s4 1985246804
        %v1648 = vunpack.c.0.s8 %v1647
        %v1649 = vlaneseq
        %v1650 = vshrl.u32 %v1649, 7
        %v1651 = vsub.s32 %v1648, %v1650
        %v1652 = vrot.slane %v1419, %v1651
        %v1654 = vunpack.c.l.s4 839922192
        %v1655 = vunpack.c.0.s8 %v1654
        %v1656 = vlaneseq
        %v1657 = vshrl.u32 %v1656, 7
        %v1658 = vsub.s32 %v1655, %v1657
        %v1659 = vrot.slane %v1426, %v1658
        %v1661 = vunpack.c.l.s4 1985246804
        %v1662 = vunpack.c.0.s8 %v1661
        %v1663 = vlaneseq
        %v1664 = vshrl.u32 %v1663, 7
        %v1665 = vsub.s32 %v1662, %v1664
        %v1666 = vrot.slane %v1426, %v1665
        %v1699 = vmul.bf16 %v1276, %v1449
        %v1700 = vmul.bf16 %v1277, %v1456
        %v1701 = vmul.bf16 %v1278, %v1463
        %v1702 = vmul.bf16 %v1279, %v1470
        %v1703 = vmul.bf16 %v1280, %v1477
        %v1704 = vmul.bf16 %v1281, %v1484
        %v1705 = vmul.bf16 %v1282, %v1491
        %v1706 = vmul.bf16 %v1283, %v1498
        %v1707 = vmul.bf16 %v1284, %v1505
        %v1708 = vmul.bf16 %v1285, %v1512
        %v1709 = vmul.bf16 %v1286, %v1519
        %v1710 = vmul.bf16 %v1287, %v1526
        %v1711 = vmul.bf16 %v1288, %v1533
        %v1712 = vmul.bf16 %v1289, %v1540
        %v1713 = vmul.bf16 %v1290, %v1547
        %v1714 = vmul.bf16 %v1291, %v1554
        %v1715 = vmul.bf16 %v1292, %v1561
        %v1716 = vmul.bf16 %v1293, %v1568
        %v1717 = vmul.bf16 %v1294, %v1575
        %v1718 = vmul.bf16 %v1295, %v1582
        %v1719 = vmul.bf16 %v1296, %v1589
        %v1720 = vmul.bf16 %v1297, %v1596
        %v1721 = vmul.bf16 %v1298, %v1603
        %v1722 = vmul.bf16 %v1299, %v1610
        %v1723 = vmul.bf16 %v1300, %v1617
        %v1724 = vmul.bf16 %v1301, %v1624
        %v1725 = vmul.bf16 %v1302, %v1631
        %v1726 = vmul.bf16 %v1303, %v1638
        %v1727 = vmul.bf16 %v1304, %v1645
        %v1728 = vmul.bf16 %v1305, %v1652
        %v1729 = vmul.bf16 %v1306, %v1659
        %v1730 = vmul.bf16 %v1307, %v1666
        %v1731 = vunpack.c.l.bf16 %v1699
        %v1732 = vunpack.c.l.bf16 %v1700
        %v1733 = vunpack.c.l.bf16 %v1701
        %v1734 = vunpack.c.l.bf16 %v1702
        %v1735 = vunpack.c.l.bf16 %v1703
        %v1736 = vunpack.c.l.bf16 %v1704
        %v1737 = vunpack.c.l.bf16 %v1705
        %v1738 = vunpack.c.l.bf16 %v1706
        %v1739 = vunpack.c.l.bf16 %v1707
        %v1740 = vunpack.c.l.bf16 %v1708
        %v1741 = vunpack.c.l.bf16 %v1709
        %v1742 = vunpack.c.l.bf16 %v1710
        %v1743 = vunpack.c.l.bf16 %v1711
        %v1744 = vunpack.c.l.bf16 %v1712
        %v1745 = vunpack.c.l.bf16 %v1713
        %v1746 = vunpack.c.l.bf16 %v1714
        %v1747 = vunpack.c.l.bf16 %v1715
        %v1748 = vunpack.c.l.bf16 %v1716
        %v1749 = vunpack.c.l.bf16 %v1717
        %v1750 = vunpack.c.l.bf16 %v1718
        %v1751 = vunpack.c.l.bf16 %v1719
        %v1752 = vunpack.c.l.bf16 %v1720
        %v1753 = vunpack.c.l.bf16 %v1721
        %v1754 = vunpack.c.l.bf16 %v1722
        %v1755 = vunpack.c.l.bf16 %v1723
        %v1756 = vunpack.c.l.bf16 %v1724
        %v1757 = vunpack.c.l.bf16 %v1725
        %v1758 = vunpack.c.l.bf16 %v1726
        %v1759 = vunpack.c.l.bf16 %v1727
        %v1760 = vunpack.c.l.bf16 %v1728
        %v1761 = vunpack.c.l.bf16 %v1729
        %v1762 = vunpack.c.l.bf16 %v1730
        %v1763 = vsel %vm460, %v1731, 0.0
        %v1764 = vsel %vm460, %v1732, 0.0
        %v1765 = vadd.f32 %v1763, %v1764
        %v1766 = vrot.slane %v1765, 4
        %v1767 = vadd.f32 %v1765, %v1766
        %v1768 = vrot.slane %v1767, 2
        %v1769 = vadd.f32 %v1767, %v1768
        %v1770 = vrot.slane %v1769, 1
        %v1771 = vadd.f32 %v1769, %v1770
        %v1772 = vsel %vm460, %v1733, 0.0
        %v1773 = vsel %vm460, %v1734, 0.0
        %v1774 = vadd.f32 %v1772, %v1773
        %v1775 = vrot.slane %v1774, 4
        %v1776 = vadd.f32 %v1774, %v1775
        %v1777 = vrot.slane %v1776, 2
        %v1778 = vadd.f32 %v1776, %v1777
        %v1779 = vrot.slane %v1778, 1
        %v1780 = vadd.f32 %v1778, %v1779
        %v1781 = vsel %vm460, %v1735, 0.0
        %v1782 = vsel %vm460, %v1736, 0.0
        %v1783 = vadd.f32 %v1781, %v1782
        %v1784 = vrot.slane %v1783, 4
        %v1785 = vadd.f32 %v1783, %v1784
        %v1786 = vrot.slane %v1785, 2
        %v1787 = vadd.f32 %v1785, %v1786
        %v1788 = vrot.slane %v1787, 1
        %v1789 = vadd.f32 %v1787, %v1788
        %v1790 = vsel %vm460, %v1737, 0.0
        %v1791 = vsel %vm460, %v1738, 0.0
        %v1792 = vadd.f32 %v1790, %v1791
        %v1793 = vrot.slane %v1792, 4
        %v1794 = vadd.f32 %v1792, %v1793
        %v1795 = vrot.slane %v1794, 2
        %v1796 = vadd.f32 %v1794, %v1795
        %v1797 = vrot.slane %v1796, 1
        %v1798 = vadd.f32 %v1796, %v1797
        %v1799 = vsel %vm460, %v1739, 0.0
        %v1800 = vsel %vm460, %v1740, 0.0
        %v1801 = vadd.f32 %v1799, %v1800
        %v1802 = vrot.slane %v1801, 4
        %v1803 = vadd.f32 %v1801, %v1802
        %v1804 = vrot.slane %v1803, 2
        %v1805 = vadd.f32 %v1803, %v1804
        %v1806 = vrot.slane %v1805, 1
        %v1807 = vadd.f32 %v1805, %v1806
        %v1808 = vsel %vm460, %v1741, 0.0
        %v1809 = vsel %vm460, %v1742, 0.0
        %v1810 = vadd.f32 %v1808, %v1809
        %v1811 = vrot.slane %v1810, 4
        %v1812 = vadd.f32 %v1810, %v1811
        %v1813 = vrot.slane %v1812, 2
        %v1814 = vadd.f32 %v1812, %v1813
        %v1815 = vrot.slane %v1814, 1
        %v1816 = vadd.f32 %v1814, %v1815
        %v1817 = vsel %vm460, %v1743, 0.0
        %v1818 = vsel %vm460, %v1744, 0.0
        %v1819 = vadd.f32 %v1817, %v1818
        %v1820 = vrot.slane %v1819, 4
        %v1821 = vadd.f32 %v1819, %v1820
        %v1822 = vrot.slane %v1821, 2
        %v1823 = vadd.f32 %v1821, %v1822
        %v1824 = vrot.slane %v1823, 1
        %v1825 = vadd.f32 %v1823, %v1824
        %v1826 = vsel %vm460, %v1745, 0.0
        %v1827 = vsel %vm460, %v1746, 0.0
        %v1828 = vadd.f32 %v1826, %v1827
        %v1829 = vrot.slane %v1828, 4
        %v1830 = vadd.f32 %v1828, %v1829
        %v1831 = vrot.slane %v1830, 2
        %v1832 = vadd.f32 %v1830, %v1831
        %v1833 = vrot.slane %v1832, 1
        %v1834 = vadd.f32 %v1832, %v1833
        %v1835 = vsel %vm460, %v1747, 0.0
        %v1836 = vsel %vm460, %v1748, 0.0
        %v1837 = vadd.f32 %v1835, %v1836
        %v1838 = vrot.slane %v1837, 4
        %v1839 = vadd.f32 %v1837, %v1838
        %v1840 = vrot.slane %v1839, 2
        %v1841 = vadd.f32 %v1839, %v1840
        %v1842 = vrot.slane %v1841, 1
        %v1843 = vadd.f32 %v1841, %v1842
        %v1844 = vsel %vm460, %v1749, 0.0
        %v1845 = vsel %vm460, %v1750, 0.0
        %v1846 = vadd.f32 %v1844, %v1845
        %v1847 = vrot.slane %v1846, 4
        %v1848 = vadd.f32 %v1846, %v1847
        %v1849 = vrot.slane %v1848, 2
        %v1850 = vadd.f32 %v1848, %v1849
        %v1851 = vrot.slane %v1850, 1
        %v1852 = vadd.f32 %v1850, %v1851
        %v1853 = vsel %vm460, %v1751, 0.0
        %v1854 = vsel %vm460, %v1752, 0.0
        %v1855 = vadd.f32 %v1853, %v1854
        %v1856 = vrot.slane %v1855, 4
        %v1857 = vadd.f32 %v1855, %v1856
        %v1858 = vrot.slane %v1857, 2
        %v1859 = vadd.f32 %v1857, %v1858
        %v1860 = vrot.slane %v1859, 1
        %v1861 = vadd.f32 %v1859, %v1860
        %v1862 = vsel %vm460, %v1753, 0.0
        %v1863 = vsel %vm460, %v1754, 0.0
        %v1864 = vadd.f32 %v1862, %v1863
        %v1865 = vrot.slane %v1864, 4
        %v1866 = vadd.f32 %v1864, %v1865
        %v1867 = vrot.slane %v1866, 2
        %v1868 = vadd.f32 %v1866, %v1867
        %v1869 = vrot.slane %v1868, 1
        %v1870 = vadd.f32 %v1868, %v1869
        %v1871 = vsel %vm460, %v1755, 0.0
        %v1872 = vsel %vm460, %v1756, 0.0
        %v1873 = vadd.f32 %v1871, %v1872
        %v1874 = vrot.slane %v1873, 4
        %v1875 = vadd.f32 %v1873, %v1874
        %v1876 = vrot.slane %v1875, 2
        %v1877 = vadd.f32 %v1875, %v1876
        %v1878 = vrot.slane %v1877, 1
        %v1879 = vadd.f32 %v1877, %v1878
        %v1880 = vsel %vm460, %v1757, 0.0
        %v1881 = vsel %vm460, %v1758, 0.0
        %v1882 = vadd.f32 %v1880, %v1881
        %v1883 = vrot.slane %v1882, 4
        %v1884 = vadd.f32 %v1882, %v1883
        %v1885 = vrot.slane %v1884, 2
        %v1886 = vadd.f32 %v1884, %v1885
        %v1887 = vrot.slane %v1886, 1
        %v1888 = vadd.f32 %v1886, %v1887
        %v1889 = vsel %vm460, %v1759, 0.0
        %v1890 = vsel %vm460, %v1760, 0.0
        %v1891 = vadd.f32 %v1889, %v1890
        %v1892 = vrot.slane %v1891, 4
        %v1893 = vadd.f32 %v1891, %v1892
        %v1894 = vrot.slane %v1893, 2
        %v1895 = vadd.f32 %v1893, %v1894
        %v1896 = vrot.slane %v1895, 1
        %v1897 = vadd.f32 %v1895, %v1896
        %v1898 = vsel %vm460, %v1761, 0.0
        %v1899 = vsel %vm460, %v1762, 0.0
        %v1900 = vadd.f32 %v1898, %v1899
        %v1901 = vrot.slane %v1900, 4
        %v1902 = vadd.f32 %v1900, %v1901
        %v1903 = vrot.slane %v1902, 2
        %v1904 = vadd.f32 %v1902, %v1903
        %v1905 = vrot.slane %v1904, 1
        %v1906 = vadd.f32 %v1904, %v1905
        %v1907 = vadd.f32 %v1771, 0.0
        %v1908 = vadd.f32 %v1780, 0.0
        %v1909 = vadd.f32 %v1789, 0.0
        %v1910 = vadd.f32 %v1798, 0.0
        %v1911 = vadd.f32 %v1807, 0.0
        %v1912 = vadd.f32 %v1816, 0.0
        %v1913 = vadd.f32 %v1825, 0.0
        %v1914 = vadd.f32 %v1834, 0.0
        %v1915 = vadd.f32 %v1843, 0.0
        %v1916 = vadd.f32 %v1852, 0.0
        %v1917 = vadd.f32 %v1861, 0.0
        %v1918 = vadd.f32 %v1870, 0.0
        %v1919 = vadd.f32 %v1879, 0.0
        %v1920 = vadd.f32 %v1888, 0.0
        %v1921 = vadd.f32 %v1897, 0.0
        %v1922 = vadd.f32 %v1906, 0.0
        %1923 = vst [vmem:[#allocation3] sm:$0xff] 0.0
        %1924 = vst [vmem:[#allocation3 + $0x8] sm:$0xff] 0.0
        %v1941 = vsel %vm1228, %v1908, %v1907
        %v1942 = vsel %vm1230, %v1909, %v1941
        %v1943 = vsel %vm1232, %v1910, %v1942
        %v1944 = vsel %vm1234, %v1911, %v1943
        %v1945 = vsel %vm1236, %v1912, %v1944
        %v1946 = vsel %vm1238, %v1913, %v1945
        %v1947 = vsel %vm1240, %v1914, %v1946
        %v1948 = vsel %vm1228, %v1916, %v1915
        %v1949 = vsel %vm1230, %v1917, %v1948
        %v1950 = vsel %vm1232, %v1918, %v1949
        %v1951 = vsel %vm1234, %v1919, %v1950
        %v1952 = vsel %vm1236, %v1920, %v1951
        %v1953 = vsel %vm1238, %v1921, %v1952
        %v1954 = vsel %vm1240, %v1922, %v1953
        %1957 = vst.msk [vmem:[#allocation3] sm:$0xff] %vm460, %v1947
        %1958 = vst.msk [vmem:[#allocation3 + $0x8] sm:$0xff] %vm460, %v1954
        %v1959 = vld [vmem:[#allocation3] sm:$0xff]
        %v1960 = vld [vmem:[#allocation3 + $0x8] sm:$0xff]
        %1961 = vst [vmem:[%s314] sm:$0xff] %v1959
        %1962 = vst [vmem:[%s314 + $0x8] sm:$0xff] %v1960
        %s1963 = sand.u32 %s132, 1
        %s1964 = scalar_lea.sflag [#allocation6], %s1963
        %s1965 = sand.u32 %s132, 1
        %s1966 = smul.addr %s1965, 16
        %s1967 = scalar_lea.vmem [#allocation12], %s1966
        %s1968 = sand.u32 %s158, 1
        %s1969 = scalar_lea.sflag [#allocation14], %s1968
        %s1970 = sand.u32 %s158, 1
        %s1971 = smul.addr %s1970, 16
        %s1972 = scalar_lea.vmem [#allocation13], %s1971
        // Predicated region
        $region53: #{tpu_custom_call.1} parent=35 // pred_check
          %p1973 = pneg %p142
        $region54: #{tpu_custom_call.1} parent=35 // pred_check_branch
          %1975 = sbr.rel (%p1973) target = $region56
        $region55: #{tpu_custom_call.1} parent=35 // pred_region
          %s1976 = smul.u32 2, %s30
          %s1978 = ssub.s32 256, 256
          %1979 = vsyncadd %s1964, %s1978
          %s1980 = smul.addr %s1976, 128
          %s1981 = scalar_lea.hbm %s4, %s1980
          %s1982 = sshll.u32 %s1967, 4
          %s1983 = int_to_ptr.vmem [resolvable:$true] %s1982
          %1988 = dma.vmem_to_hbm [thread:$0]  %s1983, 256, %s1981, %s1964, 128, 128, 8
        $region56: #{tpu_custom_call.1} parent=35 // pred_fallthru
          _
        // Predicated region
        $region57: #{tpu_custom_call.1} parent=35 // pred_check
          %p1989 = pneg %p168
        $region58: #{tpu_custom_call.1} parent=35 // pred_check_branch
          %1991 = sbr.rel (%p1989) target = $region60
        $region59: #{tpu_custom_call.1} parent=35 // pred_region
          %s1992 = smul.u32 2, %s30
          %s1994 = ssub.s32 256, 256
          %1995 = vsyncadd %s1969, %s1994
          %s1996 = smul.addr %s1992, 128
          %s1997 = scalar_lea.hbm %s5, %s1996
          %s1998 = sshll.u32 %s1972, 4
          %s1999 = int_to_ptr.vmem [resolvable:$true] %s1998
          %2004 = dma.vmem_to_hbm [thread:$0]  %s1999, 256, %s1997, %s1969, 128, 128, 8
        $region60: #{tpu_custom_call.1} parent=35 // pred_fallthru
          _
      $region36: #{tpu_custom_call.1} parent=5 // pred_fallthru
        _
      %p2005 = scmp.le.s32.totalorder 2, %s25
      // Predicated region
      $region61: #{tpu_custom_call.1} parent=5 // pred_check
        %p2006 = pneg %p2005
      $region62: #{tpu_custom_call.1} parent=5 // pred_check_branch
        %2008 = sbr.rel (%p2006) target = $region64
      $region63: #{tpu_custom_call.1} parent=5 // pred_region
        %s2009 = ssub.s32 %s25, 2
        // Predicated region
        $region65: #{tpu_custom_call.1} parent=63 // pred_check
          %p2010 = pneg %p148
        $region66: #{tpu_custom_call.1} parent=63 // pred_check_branch
          %2012 = sbr.rel (%p2010) target = $region68
        $region67: #{tpu_custom_call.1} parent=63 // pred_region
          %s2013 = sand.u32 %s133, 1
          %s2014 = scalar_lea.sflag [#allocation6], %s2013
          %s2015 = sand.u32 %s133, 1
          %s2016 = smul.addr %s2015, 16
          %s2017 = scalar_lea.vmem [#allocation12], %s2016
          %2018 = dma.done %s2014, 256
        $region68: #{tpu_custom_call.1} parent=63 // pred_fallthru
          _
        // Predicated region
        $region69: #{tpu_custom_call.1} parent=63 // pred_check
          %p2019 = pneg %p174
        $region70: #{tpu_custom_call.1} parent=63 // pred_check_branch
          %2021 = sbr.rel (%p2019) target = $region72
        $region71: #{tpu_custom_call.1} parent=63 // pred_region
          %s2022 = sand.u32 %s159, 1
          %s2023 = scalar_lea.sflag [#allocation14], %s2022
          %s2024 = sand.u32 %s159, 1
          %s2025 = smul.addr %s2024, 16
          %s2026 = scalar_lea.vmem [#allocation13], %s2025
          %2027 = dma.done %s2023, 256
        $region72: #{tpu_custom_call.1} parent=63 // pred_fallthru
          _
      $region64: #{tpu_custom_call.1} parent=5 // pred_fallthru
        _
    $region6: #{tpu_custom_call.1} parent=1 // loop_footer
      %s29 = sadd.s32 1, %s25
    $region7: #{tpu_custom_call.1} parent=1 // loop_footer_branch
      %24 = sbr.rel target = $region3
    $region8: #{tpu_custom_call.1} parent=1 // loop_exit
      _
    %2028 = vsyncpa [#allocation5], 1
    %s2029 = scalar_lea.sflag [#allocation5], 1
    %2030 = vsyncpa %s2029, 1
    %2031 = vsyncpa [#allocation8], 1
    %s2032 = scalar_lea.sflag [#allocation8], 1
    %2033 = vsyncpa %s2032, 1
    %2034 = vsyncpa [#allocation11], 1
    %2035 = vsyncpa [#allocation6], 1
    %s2036 = scalar_lea.sflag [#allocation6], 1
    %2037 = vsyncpa %s2036, 1
    %2038 = vsyncpa [#allocation14], 1
    %s2039 = scalar_lea.sflag [#allocation14], 1
    %2040 = vsyncpa %s2039, 1

</llo_original>
